<compile_context>
chip_gen: v7x
topology: tpu7x:2x2x1
jax: 0.10.0
libtpu: 0.0.40
codegen_flags: <defaults>
</compile_context>

<pallas_src>
import functools

import jax
import jax.numpy as jnp
from jax import lax
from jax.experimental import pallas as pl
from jax.experimental.pallas import tpu as pltpu

B, T, D, H = 2, 8, 32, 32          # per-problem shapes (batch, time, feat, hidden)
N_PROBLEMS = 64                    # independent (X, seed) problems in the demo
DROP_THRESH = 0.8                  # keep an element iff uniform > 0.8 (P(keep)=0.2)
# Signed-int32 view of the DROP_THRESH quantile of a uniform uint32 draw:
#   P( bitcast_i32(u32) > thresh ) == 1 - DROP_THRESH
_KEEP_THRESH_I32 = int(DROP_THRESH * (1 << 32)) - (1 << 31)  # 1288490188


def _fmix32_host(x: int) -> int:
    """murmur3 finalizer on a python int (exact 32-bit math)."""
    x &= 0xFFFFFFFF
    x ^= x >> 16
    x = (x * 0x85EBCA6B) & 0xFFFFFFFF
    x ^= x >> 13
    x = (x * 0xC2B2AE35) & 0xFFFFFFFF
    x ^= x >> 16
    return x


def _mixed_seed_i32(seed: int) -> int:
    """Host-side seed mixing -> signed int32 value passed into the kernel."""
    m = _fmix32_host(int(seed))
    return m - (1 << 32) if m >= (1 << 31) else m


def _random_keep_mask(n_rows, n_cols, seed_mixed_i32, row_offset=0):
    """Bernoulli(1 - DROP_THRESH) keep-mask via a counter hash (fmix32).

    `seed_mixed_i32` must already be mixed (see _mixed_seed_i32).  Pure jnp/lax
    integer ops -> identical results inside the Pallas kernel and on the host.
    """
    row = lax.broadcasted_iota(jnp.int32, (n_rows, n_cols), 0) + row_offset
    col = lax.broadcasted_iota(jnp.int32, (n_rows, n_cols), 1)
    idx = row * jnp.int32(n_cols) + col                   # global flat element id
    seed_u = lax.bitcast_convert_type(
        jnp.asarray(seed_mixed_i32, dtype=jnp.int32), jnp.uint32)
    k = lax.bitcast_convert_type(idx, jnp.uint32) + seed_u
    k = k ^ (k >> jnp.uint32(16))
    k = k * jnp.uint32(0x85EBCA6B)
    k = k ^ (k >> jnp.uint32(13))
    k = k * jnp.uint32(0xC2B2AE35)
    k = k ^ (k >> jnp.uint32(16))
    s = lax.bitcast_convert_type(k, jnp.int32)
    return (s > jnp.int32(_KEEP_THRESH_I32)).astype(jnp.float32)


def contrast_kernel(seed_ref, x_ref, w_ref, b_ref, tar_ref, pos_ref, *,
                    problems, batch, t_steps):
    rows = problems * batch * t_steps
    groups = problems * batch
    x = x_ref[...]                                        # (rows, D) f32, in vregs
    d = x.shape[-1]

    # --- 1. random keep-mask + positive tensor (integer VPU ops only) ---------
    # Globally unique counters across the whole batched call -> masks of the
    # P problems in this step (and of every other step) are independent.
    row_off = pl.program_id(0) * rows
    mask = _random_keep_mask(rows, d, seed_ref[0], row_off)
    pos = x * mask                                        # pos_tensor = X.mul(mask)

    # --- 2. time-mean BEFORE the matmul (linearity), register-only packing ----
    # T rows per (problem, batch) group align with f32 sublane tiles, so the
    # reshape is layout-free and the reduction is a sublane sum (XLU slot).
    inv_t = jnp.float32(1.0 / t_steps)
    tar_mean = jnp.sum(x.reshape(groups, t_steps, d), axis=1) * inv_t
    pos_mean = jnp.sum(pos.reshape(groups, t_steps, d), axis=1) * inv_t
    lhs = jnp.concatenate([tar_mean, pos_mean], axis=0)   # (2*groups, D), no VMEM scratch

    # --- 3. one packed MXU dot -> both embeddings for all P problems ----------
    out = jnp.dot(lhs, w_ref[...], preferred_element_type=jnp.float32) + b_ref[...]
    tar_ref[...] = out[:groups, :]
    pos_ref[...] = out[groups:, :]


def contrast_generator_forward(X, times, W, bias, seed=0, problems_per_step=32):
    """Batched forward.  X: (N, B, T, D) or (B, T, D).  Returns (tar_exp, pos_exp)."""
    del times  # TODO(synk): only consumed by the external model.
    squeeze = (X.ndim == 3)
    if squeeze:
        X = X[None]
    N, B_, T_, D_ = X.shape
    H_ = W.shape[1]

    # Largest divisor of N not exceeding problems_per_step.
    P = max(1, min(problems_per_step, N))
    while N % P:
        P -= 1
    steps = N // P
    rows_per_step = P * B_ * T_
    groups = P * B_

    x2 = X.reshape(N * B_ * T_, D_).astype(jnp.float32)   # free XLA-side reshape
    seed_i32 = _mixed_seed_i32(seed)

    grid_spec = pltpu.PrefetchScalarGridSpec(
        num_scalar_prefetch=1,                            # seed lands in SMEM
        grid=(steps,),
        in_specs=[
            pl.BlockSpec((rows_per_step, D_), lambda i, s: (i, 0)),  # per-step X slab
            pl.BlockSpec((D_, H_), lambda i, s: (0, 0)),             # VMEM-resident W
            pl.BlockSpec((1, H_), lambda i, s: (0, 0)),              # VMEM-resident bias
        ],
        out_specs=(
            pl.BlockSpec((groups, H_), lambda i, s: (i, 0)),
            pl.BlockSpec((groups, H_), lambda i, s: (i, 0)),
        ),
    )

    flops = 2 * (2 * N * B_) * D_ * H_
    bytes_accessed = 4 * (x2.size + W.size + bias.size + 2 * N * B_ * H_)
    cost = pl.CostEstimate(flops=flops, transcendentals=0,
                           bytes_accessed=bytes_accessed)

    tar, pos = pl.pallas_call(
        functools.partial(contrast_kernel, problems=P, batch=B_, t_steps=T_),
        out_shape=(jax.ShapeDtypeStruct((N * B_, H_), jnp.float32),
                   jax.ShapeDtypeStruct((N * B_, H_), jnp.float32)),
        grid_spec=grid_spec,
        compiler_params=pltpu.CompilerParams(
            dimension_semantics=("parallel",)),           # v7x: shard steps across cores
        cost_estimate=cost,
    )(jnp.array([seed_i32], dtype=jnp.int32), x2, W, bias)

    tar = tar.reshape(N, B_, H_)
    pos = pos.reshape(N, B_, H_)
    if squeeze:
        tar, pos = tar[0], pos[0]
    return tar, pos


if __name__ == "__main__":
    key = jax.random.PRNGKey(0)
    kx, kw, kb = jax.random.split(key, 3)

    # deterministic example inputs / synthetic model parameters
    X = jax.random.normal(kx, (N_PROBLEMS, B, T, D), dtype=jnp.float32)
    times = jnp.arange(T, dtype=jnp.float32)
    W = jax.random.normal(kw, (D, H), dtype=jnp.float32) * 0.1
    bias = jax.random.normal(kb, (1, H), dtype=jnp.float32) * 0.01

    tar_exp, pos_exp = contrast_generator_forward(X, times, W, bias, seed=0,
                                                  problems_per_step=32)
    jax.block_until_ready((tar_exp, pos_exp))

    assert tar_exp.shape == (N_PROBLEMS, B, H) and pos_exp.shape == (N_PROBLEMS, B, H)
    assert bool(jnp.all(jnp.isfinite(tar_exp))) and bool(jnp.all(jnp.isfinite(pos_exp)))

    # Host-side reference: same counter hash (same mixed seed, row_offset=0 covers
    # the whole array since element counters are global), same synthetic model.
    mask_full = _random_keep_mask(N_PROBLEMS * B * T, D,
                                  jnp.int32(_mixed_seed_i32(0)), 0)
    # statistical sanity check on the keep probability (expected ~0.2)
    keep_rate = float(jnp.mean(mask_full))
    assert 0.15 < keep_rate < 0.25, keep_rate

    pos_full = (X.reshape(N_PROBLEMS * B * T, D) * mask_full).reshape(
        N_PROBLEMS, B, T, D)
    tar_want = jnp.mean(X, axis=2) @ W + bias
    pos_want = jnp.mean(pos_full, axis=2) @ W + bias
    assert bool(jnp.allclose(tar_exp, tar_want, atol=2e-2, rtol=2e-2))
    assert bool(jnp.allclose(pos_exp, pos_want, atol=2e-2, rtol=2e-2))

    print("KERNEL_OK")
</pallas_src>

<mosaic_0001>
module attributes {stable_mosaic.version = 11 : i64} {
  func.func @contrast_kernel(%arg0: i32, %arg1: memref<1xi32, #tpu.memory_space<smem>>, %arg2: memref<512x32xf32, #tpu.memory_space<vmem>>, %arg3: memref<32x32xf32, #tpu.memory_space<vmem>>, %arg4: memref<1x32xf32, #tpu.memory_space<vmem>>, %arg5: memref<64x32xf32, #tpu.memory_space<vmem>>, %arg6: memref<64x32xf32, #tpu.memory_space<vmem>>) attributes {dimension_semantics = [#tpu.dimension_semantics<parallel>], iteration_bounds = array<i64: 2>, scalar_prefetch = 1 : i64, scratch_operands = 0 : i64, tpu.core_type = #tpu.core_type<tc>, window_params = [{transform_indices = @transform_0, window_bounds = array<i64: 512, 32>}, {pipeline_mode = #tpu.pipeline_mode<synchronous>, transform_indices = @transform_1, window_bounds = array<i64: 32, 32>}, {pipeline_mode = #tpu.pipeline_mode<synchronous>, transform_indices = @transform_2, window_bounds = array<i64: 1, 32>}, {transform_indices = @transform_3, window_bounds = array<i64: 64, 32>}, {transform_indices = @transform_4, window_bounds = array<i64: 64, 32>}]} {
    %c0 = arith.constant 0 : index
    %c0_0 = arith.constant 0 : index
    %0 = vector.load %arg2[%c0, %c0_0] : memref<512x32xf32, #tpu.memory_space<vmem>>, vector<512x32xf32>
    %c512_i32 = arith.constant 512 : i32
    %1 = arith.muli %arg0, %c512_i32 : i32
    %c0_1 = arith.constant 0 : index
    %2 = memref.load %arg1[%c0_1] : memref<1xi32, #tpu.memory_space<smem>>
    %3 = tpu.iota {dimensions = array<i32: 0>} : vector<512x32xi32>
    %4 = vector.broadcast %1 : i32 to vector<512x32xi32>
    %5 = arith.addi %3, %4 : vector<512x32xi32>
    %6 = tpu.iota {dimensions = array<i32: 1>} : vector<512x32xi32>
    %c32_i32 = arith.constant 32 : i32
    %7 = vector.broadcast %c32_i32 : i32 to vector<512x32xi32>
    %8 = arith.muli %5, %7 : vector<512x32xi32>
    %9 = arith.addi %8, %6 : vector<512x32xi32>
    %10 = arith.bitcast %2 : i32 to i32
    %11 = tpu.bitcast %9 : vector<512x32xi32> -> vector<512x32xi32>
    %12 = vector.broadcast %10 : i32 to vector<512x32xi32>
    %13 = arith.addi %11, %12 : vector<512x32xi32>
    %c16_i32 = arith.constant 16 : i32
    %14 = vector.broadcast %c16_i32 : i32 to vector<512x32xi32>
    %15 = arith.shrui %13, %14 : vector<512x32xi32>
    %16 = arith.xori %13, %15 : vector<512x32xi32>
    %c-2048144789_i32 = arith.constant -2048144789 : i32
    %17 = vector.broadcast %c-2048144789_i32 : i32 to vector<512x32xi32>
    %18 = arith.muli %16, %17 : vector<512x32xi32>
    %c13_i32 = arith.constant 13 : i32
    %19 = vector.broadcast %c13_i32 : i32 to vector<512x32xi32>
    %20 = arith.shrui %18, %19 : vector<512x32xi32>
    %21 = arith.xori %18, %20 : vector<512x32xi32>
    %c-1028477387_i32 = arith.constant -1028477387 : i32
    %22 = vector.broadcast %c-1028477387_i32 : i32 to vector<512x32xi32>
    %23 = arith.muli %21, %22 : vector<512x32xi32>
    %c16_i32_2 = arith.constant 16 : i32
    %24 = vector.broadcast %c16_i32_2 : i32 to vector<512x32xi32>
    %25 = arith.shrui %23, %24 : vector<512x32xi32>
    %26 = arith.xori %23, %25 : vector<512x32xi32>
    %27 = tpu.bitcast %26 : vector<512x32xi32> -> vector<512x32xi32>
    %c1288490188_i32 = arith.constant 1288490188 : i32
    %28 = vector.broadcast %c1288490188_i32 : i32 to vector<512x32xi32>
    %29 = arith.cmpi sgt, %27, %28 : vector<512x32xi32>
    %30 = arith.extui %29 : vector<512x32xi1> to vector<512x32xi32>
    %31 = arith.sitofp %30 : vector<512x32xi32> to vector<512x32xf32>
    %32 = arith.mulf %0, %31 : vector<512x32xf32>
    %33 = vector.shape_cast %0 : vector<512x32xf32> to vector<64x8x32xf32>
    %cst = arith.constant dense<0.000000e+00> : vector<64x32xf32>
    %34 = vector.multi_reduction <add>, %33, %cst [1] : vector<64x8x32xf32> to vector<64x32xf32>
    %cst_3 = arith.constant 1.250000e-01 : f32
    %35 = vector.broadcast %cst_3 : f32 to vector<64x32xf32>
    %36 = arith.mulf %34, %35 : vector<64x32xf32>
    %37 = vector.shape_cast %32 : vector<512x32xf32> to vector<64x8x32xf32>
    %cst_4 = arith.constant dense<0.000000e+00> : vector<64x32xf32>
    %38 = vector.multi_reduction <add>, %37, %cst_4 [1] : vector<64x8x32xf32> to vector<64x32xf32>
    %cst_5 = arith.constant 1.250000e-01 : f32
    %39 = vector.broadcast %cst_5 : f32 to vector<64x32xf32>
    %40 = arith.mulf %38, %39 : vector<64x32xf32>
    %41 = tpu.concatenate %36, %40 in 0 : vector<64x32xf32>, vector<64x32xf32> -> vector<128x32xf32>
    %c0_6 = arith.constant 0 : index
    %c0_7 = arith.constant 0 : index
    %42 = vector.load %arg3[%c0_6, %c0_7] : memref<32x32xf32, #tpu.memory_space<vmem>>, vector<32x32xf32>
    %cst_8 = arith.constant dense<0.000000e+00> : vector<128x32xf32>
    %43 = tpu.matmul %41, %42, %cst_8 {dimension_numbers = #tpu.dot_dimension_numbers<[1], [0], [0], [1], [0, 0, 1, 1], [], []>} : vector<128x32xf32>, vector<32x32xf32>, vector<128x32xf32> -> vector<128x32xf32>
    %c0_9 = arith.constant 0 : index
    %c0_10 = arith.constant 0 : index
    %44 = vector.load %arg4[%c0_9, %c0_10] : memref<1x32xf32, #tpu.memory_space<vmem>>, vector<1x32xf32>
    %45 = vector.broadcast %44 : vector<1x32xf32> to vector<128x32xf32>
    %46 = arith.addf %43, %45 : vector<128x32xf32>
    %47 = vector.extract_strided_slice %46 {offsets = [0, 0], sizes = [64, 32], strides = [1, 1]} : vector<128x32xf32> to vector<64x32xf32>
    %c0_11 = arith.constant 0 : index
    %c0_12 = arith.constant 0 : index
    %48 = vector.load %arg5[%c0_11, %c0_12] : memref<64x32xf32, #tpu.memory_space<vmem>>, vector<64x32xf32>
    tpu.vector_store %arg5[%c0_11, %c0_12], %47 {strides = array<i32>} : memref<64x32xf32, #tpu.memory_space<vmem>>, vector<64x32xf32>,
    %49 = vector.extract_strided_slice %46 {offsets = [64, 0], sizes = [64, 32], strides = [1, 1]} : vector<128x32xf32> to vector<64x32xf32>
    %c0_13 = arith.constant 0 : index
    %c0_14 = arith.constant 0 : index
    %50 = vector.load %arg6[%c0_13, %c0_14] : memref<64x32xf32, #tpu.memory_space<vmem>>, vector<64x32xf32>
    tpu.vector_store %arg6[%c0_13, %c0_14], %49 {strides = array<i32>} : memref<64x32xf32, #tpu.memory_space<vmem>>, vector<64x32xf32>,
    return
  }
  func.func @transform_0(%arg0: i32, %arg1: memref<1xi32, #tpu.memory_space<smem>>) -> (i32, i32) {
    %c0_i32 = arith.constant 0 : i32
    %c0_i32_0 = arith.constant 0 : i32
    return %arg0, %c0_i32 : i32, i32
  }
  func.func @transform_1(%arg0: i32, %arg1: memref<1xi32, #tpu.memory_space<smem>>) -> (i32, i32) {
    %c0_i32 = arith.constant 0 : i32
    %c0_i32_0 = arith.constant 0 : i32
    %c0_i32_1 = arith.constant 0 : i32
    return %c0_i32, %c0_i32_0 : i32, i32
  }
  func.func @transform_2(%arg0: i32, %arg1: memref<1xi32, #tpu.memory_space<smem>>) -> (i32, i32) {
    %c0_i32 = arith.constant 0 : i32
    %c0_i32_0 = arith.constant 0 : i32
    %c0_i32_1 = arith.constant 0 : i32
    return %c0_i32, %c0_i32_0 : i32, i32
  }
  func.func @transform_3(%arg0: i32, %arg1: memref<1xi32, #tpu.memory_space<smem>>) -> (i32, i32) {
    %c0_i32 = arith.constant 0 : i32
    %c0_i32_0 = arith.constant 0 : i32
    return %arg0, %c0_i32 : i32, i32
  }
  func.func @transform_4(%arg0: i32, %arg1: memref<1xi32, #tpu.memory_space<smem>>) -> (i32, i32) {
    %c0_i32 = arith.constant 0 : i32
    %c0_i32_0 = arith.constant 0 : i32
    return %arg0, %c0_i32 : i32, i32
  }
}

</mosaic_0001>

<llo_original>
// kernel: tpu_custom_call.1
$region0: #{tpu_custom_call.1}
  #allocation0 [shape = 'u32[]', space=smem, size = 0x4, offset = 0x4, fixed_abs, tag = 'smem constant byte address 0x4 - core index']
  #allocation1 [shape = 'u32[144,128]{1,0:T(1,128)}', space=vmem, size = 0x12000, scoped, tag = 'internal scratch']
  #allocation2 [shape = 's32[1]{0}', space=sflag, size = 0x4, scoped, tag = 'scoped memory for tpu_custom_call.1']
  #allocation3 [shape = 's32[1]{0:T(128)S(6)}', space=smem, size = 0x200, scoped, tag = 'prefetched SMEM operand 0']
  %s0 = inlined_call_operand.<no memory space> [shape: s32[1], index: 0, kind: input, shape index: {}]
  %s1 = inlined_call_operand.vmem [shape: f32[1024,32], index: 1, kind: input, shape index: {}]
  %s2 = inlined_call_operand.vmem [shape: f32[32,32], index: 2, kind: input, shape index: {}]
  %s3 = inlined_call_operand.vmem [shape: f32[1,32], index: 3, kind: input, shape index: {}]
  %s4 = inlined_call_operand.vmem [shape: f32[128,32], index: 4, kind: output, shape index: {0}]
  %s5 = inlined_call_operand.vmem [shape: f32[128,32], index: 5, kind: output, shape index: {1}]
  %6 = xla_tuple %s4, %s5
  %s7 = sld [smem:[#allocation0]]
  $region53: #{tpu_custom_call.1} parent=0
    _
  %s9 = ssub.s32 1, %s7
  %s10 = scalar_select 0, %s9, %s7
  %11 = sst [smem:[#allocation3]] %s0
  loop: start=0, step=1, limit=4
  $region2: #{tpu_custom_call.1} parent=0 // loop_pre_header
    _
  $region3: #{tpu_custom_call.1} parent=0 // loop_header
    %s13 = sphi 0, %s17
    %p14 = scmp.ge.s32.totalorder %s13, 4
    %s23 = sphi 0, %s25
    %s26 = sphi 0, %s23
    %s27 = sphi 0, %s26
    %s43 = sphi 0, %s27
    %s47 = sphi 0, %s47
    %s49 = sphi 0, %s47
    %s50 = sphi 0, %s49
    %s64 = sphi 0, %s50
    %s68 = sphi 0, %s68
    %s70 = sphi 0, %s68
    %s71 = sphi 0, %s70
    %s85 = sphi 0, %s71
    %s91 = sphi 0, %s93
    %s94 = sphi 0, %s91
    %s95 = sphi 0, %s94
    %s111 = sphi 0, %s95
    %s117 = sphi 0, %s119
    %s120 = sphi 0, %s117
    %s121 = sphi 0, %s120
    %s137 = sphi 0, %s121
  $region4: #{tpu_custom_call.1} parent=0 // loop_header_branch
    %16 = sbr.rel (%p14) target = $region8
  $region5: #{tpu_custom_call.1} parent=0 // loop_body
    %s18 = ssub.s32 %s13, 1
    %s19 = ssub.s32 %s13, 2
    %s20 = sadd.s32 %s13, 1
    %s21 = ssub.s32 %s13, %s20
    %p22 = scmp.eq.s32.totalorder %s21, 0
    %s24 = sadd.s32 %s23, 1
    %s25 = scalar_select %p22, %s23, %s24
    %p28 = pneg %p22
    %p29 = scmp.eq.s32.totalorder %s13, 1
    %p30 = por %p28, %p29
    %p31 = scmp.ne.s32.totalorder %s23, %s26
    %p32 = scmp.eq.s32.totalorder %s13, 0
    %p33 = por %p31, %p32
    %p34 = scmp.ne.s32.totalorder %s23, %s26
    %p35 = scmp.eq.s32.totalorder %s18, 1
    %p36 = por %p34, %p35
    %p37 = scmp.ne.s32.totalorder %s26, %s27
    %p38 = scmp.eq.s32.totalorder %s18, 0
    %p39 = por %p37, %p38
    %p40 = scmp.ne.s32.totalorder %s26, %s27
    %p41 = scmp.eq.s32.totalorder %s19, 1
    %p42 = por %p40, %p41
    %p44 = scmp.ne.s32.totalorder %s27, %s43
    %p45 = scmp.eq.s32.totalorder %s19, 0
    %p46 = por %p44, %p45
    %s48 = sadd.s32 %s47, 1
    %p51 = scmp.eq.s32.totalorder %s13, 1
    %p52 = scmp.ne.s32.totalorder %s47, %s49
    %p53 = scmp.eq.s32.totalorder %s13, 0
    %p54 = por %p52, %p53
    %p55 = scmp.ne.s32.totalorder %s47, %s49
    %p56 = scmp.eq.s32.totalorder %s18, 1
    %p57 = por %p55, %p56
    %p58 = scmp.ne.s32.totalorder %s49, %s50
    %p59 = scmp.eq.s32.totalorder %s18, 0
    %p60 = por %p58, %p59
    %p61 = scmp.ne.s32.totalorder %s49, %s50
    %p62 = scmp.eq.s32.totalorder %s19, 1
    %p63 = por %p61, %p62
    %p65 = scmp.ne.s32.totalorder %s50, %s64
    %p66 = scmp.eq.s32.totalorder %s19, 0
    %p67 = por %p65, %p66
    %s69 = sadd.s32 %s68, 1
    %p72 = scmp.eq.s32.totalorder %s13, 1
    %p73 = scmp.ne.s32.totalorder %s68, %s70
    %p74 = scmp.eq.s32.totalorder %s13, 0
    %p75 = por %p73, %p74
    %p76 = scmp.ne.s32.totalorder %s68, %s70
    %p77 = scmp.eq.s32.totalorder %s18, 1
    %p78 = por %p76, %p77
    %p79 = scmp.ne.s32.totalorder %s70, %s71
    %p80 = scmp.eq.s32.totalorder %s18, 0
    %p81 = por %p79, %p80
    %p82 = scmp.ne.s32.totalorder %s70, %s71
    %p83 = scmp.eq.s32.totalorder %s19, 1
    %p84 = por %p82, %p83
    %p86 = scmp.ne.s32.totalorder %s71, %s85
    %p87 = scmp.eq.s32.totalorder %s19, 0
    %p88 = por %p86, %p87
    %s89 = ssub.s32 %s13, %s20
    %p90 = scmp.eq.s32.totalorder %s89, 0
    %s92 = sadd.s32 %s91, 1
    %s93 = scalar_select %p90, %s91, %s92
    %p96 = pneg %p90
    %p97 = scmp.eq.s32.totalorder %s13, 1
    %p98 = por %p96, %p97
    %p99 = scmp.ne.s32.totalorder %s91, %s94
    %p100 = scmp.eq.s32.totalorder %s13, 0
    %p101 = por %p99, %p100
    %p102 = scmp.ne.s32.totalorder %s91, %s94
    %p103 = scmp.eq.s32.totalorder %s18, 1
    %p104 = por %p102, %p103
    %p105 = scmp.ne.s32.totalorder %s94, %s95
    %p106 = scmp.eq.s32.totalorder %s18, 0
    %p107 = por %p105, %p106
    %p108 = scmp.ne.s32.totalorder %s94, %s95
    %p109 = scmp.eq.s32.totalorder %s19, 1
    %p110 = por %p108, %p109
    %p112 = scmp.ne.s32.totalorder %s95, %s111
    %p113 = scmp.eq.s32.totalorder %s19, 0
    %p114 = por %p112, %p113
    %s115 = ssub.s32 %s13, %s20
    %p116 = scmp.eq.s32.totalorder %s115, 0
    %s118 = sadd.s32 %s117, 1
    %s119 = scalar_select %p116, %s117, %s118
    %p122 = pneg %p116
    %p123 = scmp.eq.s32.totalorder %s13, 1
    %p124 = por %p122, %p123
    %p125 = scmp.ne.s32.totalorder %s117, %s120
    %p126 = scmp.eq.s32.totalorder %s13, 0
    %p127 = por %p125, %p126
    %p128 = scmp.ne.s32.totalorder %s117, %s120
    %p129 = scmp.eq.s32.totalorder %s18, 1
    %p130 = por %p128, %p129
    %p131 = scmp.ne.s32.totalorder %s120, %s121
    %p132 = scmp.eq.s32.totalorder %s18, 0
    %p133 = por %p131, %p132
    %p134 = scmp.ne.s32.totalorder %s120, %s121
    %p135 = scmp.eq.s32.totalorder %s19, 1
    %p136 = por %p134, %p135
    %p138 = scmp.ne.s32.totalorder %s121, %s137
    %p139 = scmp.eq.s32.totalorder %s19, 0
    %p140 = por %p138, %p139
    %p141 = scmp.le.s32.totalorder 1, %s13
    %p142 = scmp.lt.s32.totalorder %s13, 3
    %p143 = pnand %p141, %p142
    %p144 = pneg %p143
    // Predicated region
    $region9: #{tpu_custom_call.1} parent=5 // pred_check
      _
    $region10: #{tpu_custom_call.1} parent=5 // pred_check_branch
      %146 = sbr.rel (%p143) target = $region12
    $region11: #{tpu_custom_call.1} parent=5 // pred_region
      %s147 = ssub.s32 %s13, 1
      // Predicated region
      $region13: #{tpu_custom_call.1} parent=11 // pred_check
        %p148 = pneg %p60
      $region14: #{tpu_custom_call.1} parent=11 // pred_check_branch
        %150 = sbr.rel (%p148) target = $region16
      $region15: #{tpu_custom_call.1} parent=11 // pred_region
        _
      $region16: #{tpu_custom_call.1} parent=11 // pred_fallthru
        _
      // Predicated region
      $region17: #{tpu_custom_call.1} parent=11 // pred_check
        %p151 = pneg %p81
      $region18: #{tpu_custom_call.1} parent=11 // pred_check_branch
        %153 = sbr.rel (%p151) target = $region20
      $region19: #{tpu_custom_call.1} parent=11 // pred_region
        _
      $region20: #{tpu_custom_call.1} parent=11 // pred_fallthru
        _
    $region12: #{tpu_custom_call.1} parent=5 // pred_fallthru
      _
    %p154 = scmp.lt.s32.totalorder %s13, 2
    // Predicated region
    $region21: #{tpu_custom_call.1} parent=5 // pred_check
      %p155 = pneg %p154
    $region22: #{tpu_custom_call.1} parent=5 // pred_check_branch
      %157 = sbr.rel (%p155) target = $region24
    $region23: #{tpu_custom_call.1} parent=5 // pred_region
      // Predicated region
      $region25: #{tpu_custom_call.1} parent=23 // pred_check
        %p158 = pneg %p33
      $region26: #{tpu_custom_call.1} parent=23 // pred_check_branch
        %160 = sbr.rel (%p158) target = $region28
      $region27: #{tpu_custom_call.1} parent=23 // pred_region
        %s161 = smul.u32 64, %s13
        %p162 = scmp.lt.s32.totalorder %s161, 127
        %s163 = scalar_select %p162, %s161, 127
        %s164 = smul.addr %s163, 8
        %s165 = scalar_lea.vmem %s1, %s164
        %s166 = smul.u32 64, %s13
      $region28: #{tpu_custom_call.1} parent=23 // pred_fallthru
        _
    $region24: #{tpu_custom_call.1} parent=5 // pred_fallthru
      _
    %p167 = scmp.le.s32.totalorder 1, %s13
    %p168 = scmp.lt.s32.totalorder %s13, 3
    %p169 = pnand %p167, %p168
    %p170 = pneg %p169
    // Predicated region
    $region29: #{tpu_custom_call.1} parent=5 // pred_check
      _
    $region30: #{tpu_custom_call.1} parent=5 // pred_check_branch
      %172 = sbr.rel (%p169) target = $region32
    $region31: #{tpu_custom_call.1} parent=5 // pred_region
      %s173 = ssub.s32 %s13, 1
      %s174 = smul.u32 64, %s18
      %p175 = scmp.lt.s32.totalorder %s174, 127
      %s176 = scalar_select %p175, %s174, 127
      %s177 = smul.addr %s176, 8
      %s178 = scalar_lea.vmem %s1, %s177
      %p179 = pneg %p39
      %p180 = pneg %p36
      %p181 = pneg %p60
      %p182 = pneg %p57
      %p183 = pneg %p81
      %p184 = pneg %p78
      %p185 = pneg %p107
      %p186 = pneg %p104
      %s187 = smul.u32 8, %s18
      %p188 = scmp.lt.s32.totalorder %s187, 15
      %s189 = scalar_select %p188, %s187, 15
      %s190 = smul.addr %s189, 8
      %s191 = scalar_lea.vmem %s4, %s190
      %p192 = pneg %p133
      %p193 = pneg %p130
      %s194 = smul.u32 8, %s18
      %p195 = scmp.lt.s32.totalorder %s194, 15
      %s196 = scalar_select %p195, %s194, 15
      %s197 = smul.addr %s196, 8
      %s198 = scalar_lea.vmem %s5, %s197
      %s199 = smul.u32 64, %s18
      %p200 = scmp.lt.s32.totalorder %s199, 127
      %s201 = scalar_select %p200, %s199, 127
      %s202 = smul.addr %s201, 8
      %s203 = scalar_lea.vmem %s1, %s202
      %s204 = smul.u32 64, %s18
      %s205 = smul.u32 8, %s18
      %p206 = scmp.lt.s32.totalorder %s205, 15
      %s207 = scalar_select %p206, %s205, 15
      %s208 = smul.addr %s207, 8
      %s209 = scalar_lea.vmem %s4, %s208
      %s210 = smul.u32 8, %s18
      %s211 = smul.u32 8, %s18
      %p212 = scmp.lt.s32.totalorder %s211, 15
      %s213 = scalar_select %p212, %s211, 15
      %s214 = smul.addr %s213, 8
      %s215 = scalar_lea.vmem %s5, %s214
      %s216 = smul.u32 8, %s18
      %v217 = vld [vmem:[%s203] sm:$0xff]
      %v218 = vld [vmem:[%s203 + $0x8] sm:$0xff]
      %v219 = vld [vmem:[%s203 + $0x10] sm:$0xff]
      %v220 = vld [vmem:[%s203 + $0x18] sm:$0xff]
      %v221 = vld [vmem:[%s203 + $0x20] sm:$0xff]
      %v222 = vld [vmem:[%s203 + $0x28] sm:$0xff]
      %v223 = vld [vmem:[%s203 + $0x30] sm:$0xff]
      %v224 = vld [vmem:[%s203 + $0x38] sm:$0xff]
      %v225 = vld [vmem:[%s203 + $0x40] sm:$0xff]
      %v226 = vld [vmem:[%s203 + $0x48] sm:$0xff]
      %v227 = vld [vmem:[%s203 + $0x50] sm:$0xff]
      %v228 = vld [vmem:[%s203 + $0x58] sm:$0xff]
      %v229 = vld [vmem:[%s203 + $0x60] sm:$0xff]
      %v230 = vld [vmem:[%s203 + $0x68] sm:$0xff]
      %v231 = vld [vmem:[%s203 + $0x70] sm:$0xff]
      %v232 = vld [vmem:[%s203 + $0x78] sm:$0xff]
      %v233 = vld [vmem:[%s203 + $0x80] sm:$0xff]
      %v234 = vld [vmem:[%s203 + $0x88] sm:$0xff]
      %v235 = vld [vmem:[%s203 + $0x90] sm:$0xff]
      %v236 = vld [vmem:[%s203 + $0x98] sm:$0xff]
      %v237 = vld [vmem:[%s203 + $0xa0] sm:$0xff]
      %v238 = vld [vmem:[%s203 + $0xa8] sm:$0xff]
      %v239 = vld [vmem:[%s203 + $0xb0] sm:$0xff]
      %v240 = vld [vmem:[%s203 + $0xb8] sm:$0xff]
      %v241 = vld [vmem:[%s203 + $0xc0] sm:$0xff]
      %v242 = vld [vmem:[%s203 + $0xc8] sm:$0xff]
      %v243 = vld [vmem:[%s203 + $0xd0] sm:$0xff]
      %v244 = vld [vmem:[%s203 + $0xd8] sm:$0xff]
      %v245 = vld [vmem:[%s203 + $0xe0] sm:$0xff]
      %v246 = vld [vmem:[%s203 + $0xe8] sm:$0xff]
      %v247 = vld [vmem:[%s203 + $0xf0] sm:$0xff]
      %v248 = vld [vmem:[%s203 + $0xf8] sm:$0xff]
      %v249 = vld [vmem:[%s203 + $0x100] sm:$0xff]
      %v250 = vld [vmem:[%s203 + $0x108] sm:$0xff]
      %v251 = vld [vmem:[%s203 + $0x110] sm:$0xff]
      %v252 = vld [vmem:[%s203 + $0x118] sm:$0xff]
      %v253 = vld [vmem:[%s203 + $0x120] sm:$0xff]
      %v254 = vld [vmem:[%s203 + $0x128] sm:$0xff]
      %v255 = vld [vmem:[%s203 + $0x130] sm:$0xff]
      %v256 = vld [vmem:[%s203 + $0x138] sm:$0xff]
      %v257 = vld [vmem:[%s203 + $0x140] sm:$0xff]
      %v258 = vld [vmem:[%s203 + $0x148] sm:$0xff]
      %v259 = vld [vmem:[%s203 + $0x150] sm:$0xff]
      %v260 = vld [vmem:[%s203 + $0x158] sm:$0xff]
      %v261 = vld [vmem:[%s203 + $0x160] sm:$0xff]
      %v262 = vld [vmem:[%s203 + $0x168] sm:$0xff]
      %v263 = vld [vmem:[%s203 + $0x170] sm:$0xff]
      %v264 = vld [vmem:[%s203 + $0x178] sm:$0xff]
      %v265 = vld [vmem:[%s203 + $0x180] sm:$0xff]
      %v266 = vld [vmem:[%s203 + $0x188] sm:$0xff]
      %v267 = vld [vmem:[%s203 + $0x190] sm:$0xff]
      %v268 = vld [vmem:[%s203 + $0x198] sm:$0xff]
      %v269 = vld [vmem:[%s203 + $0x1a0] sm:$0xff]
      %v270 = vld [vmem:[%s203 + $0x1a8] sm:$0xff]
      %v271 = vld [vmem:[%s203 + $0x1b0] sm:$0xff]
      %v272 = vld [vmem:[%s203 + $0x1b8] sm:$0xff]
      %v273 = vld [vmem:[%s203 + $0x1c0] sm:$0xff]
      %v274 = vld [vmem:[%s203 + $0x1c8] sm:$0xff]
      %v275 = vld [vmem:[%s203 + $0x1d0] sm:$0xff]
      %v276 = vld [vmem:[%s203 + $0x1d8] sm:$0xff]
      %v277 = vld [vmem:[%s203 + $0x1e0] sm:$0xff]
      %v278 = vld [vmem:[%s203 + $0x1e8] sm:$0xff]
      %v279 = vld [vmem:[%s203 + $0x1f0] sm:$0xff]
      %v280 = vld [vmem:[%s203 + $0x1f8] sm:$0xff]
      %s281 = smul.u32 %s18, 512
      %s282 = sld [smem:[#allocation3]]
      %v283 = vlaneseq
      %v284 = vshrl.u32 %v283, 7
      %v285 = vadd.s32 %v284, 8
      %v286 = vadd.s32 %v284, 16
      %v287 = vadd.s32 %v284, 24
      %v288 = vadd.s32 %v284, 32
      %v289 = vadd.s32 %v284, 40
      %v290 = vadd.s32 %v284, 48
      %v291 = vadd.s32 %v284, 56
      %v292 = vadd.s32 %v284, 64
      %v293 = vadd.s32 %v284, 72
      %v294 = vadd.s32 %v284, 80
      %v295 = vadd.s32 %v284, 88
      %v296 = vadd.s32 %v284, 96
      %v297 = vadd.s32 %v284, 104
      %v298 = vadd.s32 %v284, 112
      %v299 = vadd.s32 %v284, 120
      %v300 = vadd.s32 %v284, 128
      %v301 = vadd.s32 %v284, 136
      %v302 = vadd.s32 %v284, 144
      %v303 = vadd.s32 %v284, 152
      %v304 = vadd.s32 %v284, 160
      %v305 = vadd.s32 %v284, 168
      %v306 = vadd.s32 %v284, 176
      %v307 = vadd.s32 %v284, 184
      %v308 = vadd.s32 %v284, 192
      %v309 = vadd.s32 %v284, 200
      %v310 = vadd.s32 %v284, 208
      %v311 = vadd.s32 %v284, 216
      %v312 = vadd.s32 %v284, 224
      %v313 = vadd.s32 %v284, 232
      %v314 = vadd.s32 %v284, 240
      %v315 = vadd.s32 %v284, 248
      %v316 = vadd.s32 %v284, 256
      %v317 = vadd.s32 %v284, 264
      %v318 = vadd.s32 %v284, 272
      %v319 = vadd.s32 %v284, 280
      %v320 = vadd.s32 %v284, 288
      %v321 = vadd.s32 %v284, 296
      %v322 = vadd.s32 %v284, 304
      %v323 = vadd.s32 %v284, 312
      %v324 = vadd.s32 %v284, 320
      %v325 = vadd.s32 %v284, 328
      %v326 = vadd.s32 %v284, 336
      %v327 = vadd.s32 %v284, 344
      %v328 = vadd.s32 %v284, 352
      %v329 = vadd.s32 %v284, 360
      %v330 = vadd.s32 %v284, 368
      %v331 = vadd.s32 %v284, 376
      %v332 = vadd.s32 %v284, 384
      %v333 = vadd.s32 %v284, 392
      %v334 = vadd.s32 %v284, 400
      %v335 = vadd.s32 %v284, 408
      %v336 = vadd.s32 %v284, 416
      %v337 = vadd.s32 %v284, 424
      %v338 = vadd.s32 %v284, 432
      %v339 = vadd.s32 %v284, 440
      %v340 = vadd.s32 %v284, 448
      %v341 = vadd.s32 %v284, 456
      %v342 = vadd.s32 %v284, 464
      %v343 = vadd.s32 %v284, 472
      %v344 = vadd.s32 %v284, 480
      %v345 = vadd.s32 %v284, 488
      %v346 = vadd.s32 %v284, 496
      %v347 = vadd.s32 %v284, 504
      %v348 = vstv %s281
      %v349 = vadd.s32 %v284, %v348
      %v350 = vadd.s32 %v285, %v348
      %v351 = vadd.s32 %v286, %v348
      %v352 = vadd.s32 %v287, %v348
      %v353 = vadd.s32 %v288, %v348
      %v354 = vadd.s32 %v289, %v348
      %v355 = vadd.s32 %v290, %v348
      %v356 = vadd.s32 %v291, %v348
      %v357 = vadd.s32 %v292, %v348
      %v358 = vadd.s32 %v293, %v348
      %v359 = vadd.s32 %v294, %v348
      %v360 = vadd.s32 %v295, %v348
      %v361 = vadd.s32 %v296, %v348
      %v362 = vadd.s32 %v297, %v348
      %v363 = vadd.s32 %v298, %v348
      %v364 = vadd.s32 %v299, %v348
      %v365 = vadd.s32 %v300, %v348
      %v366 = vadd.s32 %v301, %v348
      %v367 = vadd.s32 %v302, %v348
      %v368 = vadd.s32 %v303, %v348
      %v369 = vadd.s32 %v304, %v348
      %v370 = vadd.s32 %v305, %v348
      %v371 = vadd.s32 %v306, %v348
      %v372 = vadd.s32 %v307, %v348
      %v373 = vadd.s32 %v308, %v348
      %v374 = vadd.s32 %v309, %v348
      %v375 = vadd.s32 %v310, %v348
      %v376 = vadd.s32 %v311, %v348
      %v377 = vadd.s32 %v312, %v348
      %v378 = vadd.s32 %v313, %v348
      %v379 = vadd.s32 %v314, %v348
      %v380 = vadd.s32 %v315, %v348
      %v381 = vadd.s32 %v316, %v348
      %v382 = vadd.s32 %v317, %v348
      %v383 = vadd.s32 %v318, %v348
      %v384 = vadd.s32 %v319, %v348
      %v385 = vadd.s32 %v320, %v348
      %v386 = vadd.s32 %v321, %v348
      %v387 = vadd.s32 %v322, %v348
      %v388 = vadd.s32 %v323, %v348
      %v389 = vadd.s32 %v324, %v348
      %v390 = vadd.s32 %v325, %v348
      %v391 = vadd.s32 %v326, %v348
      %v392 = vadd.s32 %v327, %v348
      %v393 = vadd.s32 %v328, %v348
      %v394 = vadd.s32 %v329, %v348
      %v395 = vadd.s32 %v330, %v348
      %v396 = vadd.s32 %v331, %v348
      %v397 = vadd.s32 %v332, %v348
      %v398 = vadd.s32 %v333, %v348
      %v399 = vadd.s32 %v334, %v348
      %v400 = vadd.s32 %v335, %v348
      %v401 = vadd.s32 %v336, %v348
      %v402 = vadd.s32 %v337, %v348
      %v403 = vadd.s32 %v338, %v348
      %v404 = vadd.s32 %v339, %v348
      %v405 = vadd.s32 %v340, %v348
      %v406 = vadd.s32 %v341, %v348
      %v407 = vadd.s32 %v342, %v348
      %v408 = vadd.s32 %v343, %v348
      %v409 = vadd.s32 %v344, %v348
      %v410 = vadd.s32 %v345, %v348
      %v411 = vadd.s32 %v346, %v348
      %v412 = vadd.s32 %v347, %v348
      %v413 = vlaneseq
      %v414 = vand.u32 %v413, 127
      %v415 = vmul.u32 %v349, 32
      %v416 = vmul.u32 %v350, 32
      %v417 = vmul.u32 %v351, 32
      %v418 = vmul.u32 %v352, 32
      %v419 = vmul.u32 %v353, 32
      %v420 = vmul.u32 %v354, 32
      %v421 = vmul.u32 %v355, 32
      %v422 = vmul.u32 %v356, 32
      %v423 = vmul.u32 %v357, 32
      %v424 = vmul.u32 %v358, 32
      %v425 = vmul.u32 %v359, 32
      %v426 = vmul.u32 %v360, 32
      %v427 = vmul.u32 %v361, 32
      %v428 = vmul.u32 %v362, 32
      %v429 = vmul.u32 %v363, 32
      %v430 = vmul.u32 %v364, 32
      %v431 = vmul.u32 %v365, 32
      %v432 = vmul.u32 %v366, 32
      %v433 = vmul.u32 %v367, 32
      %v434 = vmul.u32 %v368, 32
      %v435 = vmul.u32 %v369, 32
      %v436 = vmul.u32 %v370, 32
      %v437 = vmul.u32 %v371, 32
      %v438 = vmul.u32 %v372, 32
      %v439 = vmul.u32 %v373, 32
      %v440 = vmul.u32 %v374, 32
      %v441 = vmul.u32 %v375, 32
      %v442 = vmul.u32 %v376, 32
      %v443 = vmul.u32 %v377, 32
      %v444 = vmul.u32 %v378, 32
      %v445 = vmul.u32 %v379, 32
      %v446 = vmul.u32 %v380, 32
      %v447 = vmul.u32 %v381, 32
      %v448 = vmul.u32 %v382, 32
      %v449 = vmul.u32 %v383, 32
      %v450 = vmul.u32 %v384, 32
      %v451 = vmul.u32 %v385, 32
      %v452 = vmul.u32 %v386, 32
      %v453 = vmul.u32 %v387, 32
      %v454 = vmul.u32 %v388, 32
      %v455 = vmul.u32 %v389, 32
      %v456 = vmul.u32 %v390, 32
      %v457 = vmul.u32 %v391, 32
      %v458 = vmul.u32 %v392, 32
      %v459 = vmul.u32 %v393, 32
      %v460 = vmul.u32 %v394, 32
      %v461 = vmul.u32 %v395, 32
      %v462 = vmul.u32 %v396, 32
      %v463 = vmul.u32 %v397, 32
      %v464 = vmul.u32 %v398, 32
      %v465 = vmul.u32 %v399, 32
      %v466 = vmul.u32 %v400, 32
      %v467 = vmul.u32 %v401, 32
      %v468 = vmul.u32 %v402, 32
      %v469 = vmul.u32 %v403, 32
      %v470 = vmul.u32 %v404, 32
      %v471 = vmul.u32 %v405, 32
      %v472 = vmul.u32 %v406, 32
      %v473 = vmul.u32 %v407, 32
      %v474 = vmul.u32 %v408, 32
      %v475 = vmul.u32 %v409, 32
      %v476 = vmul.u32 %v410, 32
      %v477 = vmul.u32 %v411, 32
      %v478 = vmul.u32 %v412, 32
      %v479 = vadd.s32 %v415, %v414
      %v480 = vadd.s32 %v416, %v414
      %v481 = vadd.s32 %v417, %v414
      %v482 = vadd.s32 %v418, %v414
      %v483 = vadd.s32 %v419, %v414
      %v484 = vadd.s32 %v420, %v414
      %v485 = vadd.s32 %v421, %v414
      %v486 = vadd.s32 %v422, %v414
      %v487 = vadd.s32 %v423, %v414
      %v488 = vadd.s32 %v424, %v414
      %v489 = vadd.s32 %v425, %v414
      %v490 = vadd.s32 %v426, %v414
      %v491 = vadd.s32 %v427, %v414
      %v492 = vadd.s32 %v428, %v414
      %v493 = vadd.s32 %v429, %v414
      %v494 = vadd.s32 %v430, %v414
      %v495 = vadd.s32 %v431, %v414
      %v496 = vadd.s32 %v432, %v414
      %v497 = vadd.s32 %v433, %v414
      %v498 = vadd.s32 %v434, %v414
      %v499 = vadd.s32 %v435, %v414
      %v500 = vadd.s32 %v436, %v414
      %v501 = vadd.s32 %v437, %v414
      %v502 = vadd.s32 %v438, %v414
      %v503 = vadd.s32 %v439, %v414
      %v504 = vadd.s32 %v440, %v414
      %v505 = vadd.s32 %v441, %v414
      %v506 = vadd.s32 %v442, %v414
      %v507 = vadd.s32 %v443, %v414
      %v508 = vadd.s32 %v444, %v414
      %v509 = vadd.s32 %v445, %v414
      %v510 = vadd.s32 %v446, %v414
      %v511 = vadd.s32 %v447, %v414
      %v512 = vadd.s32 %v448, %v414
      %v513 = vadd.s32 %v449, %v414
      %v514 = vadd.s32 %v450, %v414
      %v515 = vadd.s32 %v451, %v414
      %v516 = vadd.s32 %v452, %v414
      %v517 = vadd.s32 %v453, %v414
      %v518 = vadd.s32 %v454, %v414
      %v519 = vadd.s32 %v455, %v414
      %v520 = vadd.s32 %v456, %v414
      %v521 = vadd.s32 %v457, %v414
      %v522 = vadd.s32 %v458, %v414
      %v523 = vadd.s32 %v459, %v414
      %v524 = vadd.s32 %v460, %v414
      %v525 = vadd.s32 %v461, %v414
      %v526 = vadd.s32 %v462, %v414
      %v527 = vadd.s32 %v463, %v414
      %v528 = vadd.s32 %v464, %v414
      %v529 = vadd.s32 %v465, %v414
      %v530 = vadd.s32 %v466, %v414
      %v531 = vadd.s32 %v467, %v414
      %v532 = vadd.s32 %v468, %v414
      %v533 = vadd.s32 %v469, %v414
      %v534 = vadd.s32 %v470, %v414
      %v535 = vadd.s32 %v471, %v414
      %v536 = vadd.s32 %v472, %v414
      %v537 = vadd.s32 %v473, %v414
      %v538 = vadd.s32 %v474, %v414
      %v539 = vadd.s32 %v475, %v414
      %v540 = vadd.s32 %v476, %v414
      %v541 = vadd.s32 %v477, %v414
      %v542 = vadd.s32 %v478, %v414
      %v543 = vstv %s282
      %v544 = vadd.s32 %v479, %v543
      %v545 = vadd.s32 %v480, %v543
      %v546 = vadd.s32 %v481, %v543
      %v547 = vadd.s32 %v482, %v543
      %v548 = vadd.s32 %v483, %v543
      %v549 = vadd.s32 %v484, %v543
      %v550 = vadd.s32 %v485, %v543
      %v551 = vadd.s32 %v486, %v543
      %v552 = vadd.s32 %v487, %v543
      %v553 = vadd.s32 %v488, %v543
      %v554 = vadd.s32 %v489, %v543
      %v555 = vadd.s32 %v490, %v543
      %v556 = vadd.s32 %v491, %v543
      %v557 = vadd.s32 %v492, %v543
      %v558 = vadd.s32 %v493, %v543
      %v559 = vadd.s32 %v494, %v543
      %v560 = vadd.s32 %v495, %v543
      %v561 = vadd.s32 %v496, %v543
      %v562 = vadd.s32 %v497, %v543
      %v563 = vadd.s32 %v498, %v543
      %v564 = vadd.s32 %v499, %v543
      %v565 = vadd.s32 %v500, %v543
      %v566 = vadd.s32 %v501, %v543
      %v567 = vadd.s32 %v502, %v543
      %v568 = vadd.s32 %v503, %v543
      %v569 = vadd.s32 %v504, %v543
      %v570 = vadd.s32 %v505, %v543
      %v571 = vadd.s32 %v506, %v543
      %v572 = vadd.s32 %v507, %v543
      %v573 = vadd.s32 %v508, %v543
      %v574 = vadd.s32 %v509, %v543
      %v575 = vadd.s32 %v510, %v543
      %v576 = vadd.s32 %v511, %v543
      %v577 = vadd.s32 %v512, %v543
      %v578 = vadd.s32 %v513, %v543
      %v579 = vadd.s32 %v514, %v543
      %v580 = vadd.s32 %v515, %v543
      %v581 = vadd.s32 %v516, %v543
      %v582 = vadd.s32 %v517, %v543
      %v583 = vadd.s32 %v518, %v543
      %v584 = vadd.s32 %v519, %v543
      %v585 = vadd.s32 %v520, %v543
      %v586 = vadd.s32 %v521, %v543
      %v587 = vadd.s32 %v522, %v543
      %v588 = vadd.s32 %v523, %v543
      %v589 = vadd.s32 %v524, %v543
      %v590 = vadd.s32 %v525, %v543
      %v591 = vadd.s32 %v526, %v543
      %v592 = vadd.s32 %v527, %v543
      %v593 = vadd.s32 %v528, %v543
      %v594 = vadd.s32 %v529, %v543
      %v595 = vadd.s32 %v530, %v543
      %v596 = vadd.s32 %v531, %v543
      %v597 = vadd.s32 %v532, %v543
      %v598 = vadd.s32 %v533, %v543
      %v599 = vadd.s32 %v534, %v543
      %v600 = vadd.s32 %v535, %v543
      %v601 = vadd.s32 %v536, %v543
      %v602 = vadd.s32 %v537, %v543
      %v603 = vadd.s32 %v538, %v543
      %v604 = vadd.s32 %v539, %v543
      %v605 = vadd.s32 %v540, %v543
      %v606 = vadd.s32 %v541, %v543
      %v607 = vadd.s32 %v542, %v543
      %v608 = vshrl.u32 %v544, 16
      %v609 = vshrl.u32 %v545, 16
      %v610 = vshrl.u32 %v546, 16
      %v611 = vshrl.u32 %v547, 16
      %v612 = vshrl.u32 %v548, 16
      %v613 = vshrl.u32 %v549, 16
      %v614 = vshrl.u32 %v550, 16
      %v615 = vshrl.u32 %v551, 16
      %v616 = vshrl.u32 %v552, 16
      %v617 = vshrl.u32 %v553, 16
      %v618 = vshrl.u32 %v554, 16
      %v619 = vshrl.u32 %v555, 16
      %v620 = vshrl.u32 %v556, 16
      %v621 = vshrl.u32 %v557, 16
      %v622 = vshrl.u32 %v558, 16
      %v623 = vshrl.u32 %v559, 16
      %v624 = vshrl.u32 %v560, 16
      %v625 = vshrl.u32 %v561, 16
      %v626 = vshrl.u32 %v562, 16
      %v627 = vshrl.u32 %v563, 16
      %v628 = vshrl.u32 %v564, 16
      %v629 = vshrl.u32 %v565, 16
      %v630 = vshrl.u32 %v566, 16
      %v631 = vshrl.u32 %v567, 16
      %v632 = vshrl.u32 %v568, 16
      %v633 = vshrl.u32 %v569, 16
      %v634 = vshrl.u32 %v570, 16
      %v635 = vshrl.u32 %v571, 16
      %v636 = vshrl.u32 %v572, 16
      %v637 = vshrl.u32 %v573, 16
      %v638 = vshrl.u32 %v574, 16
      %v639 = vshrl.u32 %v575, 16
      %v640 = vshrl.u32 %v576, 16
      %v641 = vshrl.u32 %v577, 16
      %v642 = vshrl.u32 %v578, 16
      %v643 = vshrl.u32 %v579, 16
      %v644 = vshrl.u32 %v580, 16
      %v645 = vshrl.u32 %v581, 16
      %v646 = vshrl.u32 %v582, 16
      %v647 = vshrl.u32 %v583, 16
      %v648 = vshrl.u32 %v584, 16
      %v649 = vshrl.u32 %v585, 16
      %v650 = vshrl.u32 %v586, 16
      %v651 = vshrl.u32 %v587, 16
      %v652 = vshrl.u32 %v588, 16
      %v653 = vshrl.u32 %v589, 16
      %v654 = vshrl.u32 %v590, 16
      %v655 = vshrl.u32 %v591, 16
      %v656 = vshrl.u32 %v592, 16
      %v657 = vshrl.u32 %v593, 16
      %v658 = vshrl.u32 %v594, 16
      %v659 = vshrl.u32 %v595, 16
      %v660 = vshrl.u32 %v596, 16
      %v661 = vshrl.u32 %v597, 16
      %v662 = vshrl.u32 %v598, 16
      %v663 = vshrl.u32 %v599, 16
      %v664 = vshrl.u32 %v600, 16
      %v665 = vshrl.u32 %v601, 16
      %v666 = vshrl.u32 %v602, 16
      %v667 = vshrl.u32 %v603, 16
      %v668 = vshrl.u32 %v604, 16
      %v669 = vshrl.u32 %v605, 16
      %v670 = vshrl.u32 %v606, 16
      %v671 = vshrl.u32 %v607, 16
      %v672 = vxor.u32 %v544, %v608
      %v673 = vxor.u32 %v545, %v609
      %v674 = vxor.u32 %v546, %v610
      %v675 = vxor.u32 %v547, %v611
      %v676 = vxor.u32 %v548, %v612
      %v677 = vxor.u32 %v549, %v613
      %v678 = vxor.u32 %v550, %v614
      %v679 = vxor.u32 %v551, %v615
      %v680 = vxor.u32 %v552, %v616
      %v681 = vxor.u32 %v553, %v617
      %v682 = vxor.u32 %v554, %v618
      %v683 = vxor.u32 %v555, %v619
      %v684 = vxor.u32 %v556, %v620
      %v685 = vxor.u32 %v557, %v621
      %v686 = vxor.u32 %v558, %v622
      %v687 = vxor.u32 %v559, %v623
      %v688 = vxor.u32 %v560, %v624
      %v689 = vxor.u32 %v561, %v625
      %v690 = vxor.u32 %v562, %v626
      %v691 = vxor.u32 %v563, %v627
      %v692 = vxor.u32 %v564, %v628
      %v693 = vxor.u32 %v565, %v629
      %v694 = vxor.u32 %v566, %v630
      %v695 = vxor.u32 %v567, %v631
      %v696 = vxor.u32 %v568, %v632
      %v697 = vxor.u32 %v569, %v633
      %v698 = vxor.u32 %v570, %v634
      %v699 = vxor.u32 %v571, %v635
      %v700 = vxor.u32 %v572, %v636
      %v701 = vxor.u32 %v573, %v637
      %v702 = vxor.u32 %v574, %v638
      %v703 = vxor.u32 %v575, %v639
      %v704 = vxor.u32 %v576, %v640
      %v705 = vxor.u32 %v577, %v641
      %v706 = vxor.u32 %v578, %v642
      %v707 = vxor.u32 %v579, %v643
      %v708 = vxor.u32 %v580, %v644
      %v709 = vxor.u32 %v581, %v645
      %v710 = vxor.u32 %v582, %v646
      %v711 = vxor.u32 %v583, %v647
      %v712 = vxor.u32 %v584, %v648
      %v713 = vxor.u32 %v585, %v649
      %v714 = vxor.u32 %v586, %v650
      %v715 = vxor.u32 %v587, %v651
      %v716 = vxor.u32 %v588, %v652
      %v717 = vxor.u32 %v589, %v653
      %v718 = vxor.u32 %v590, %v654
      %v719 = vxor.u32 %v591, %v655
      %v720 = vxor.u32 %v592, %v656
      %v721 = vxor.u32 %v593, %v657
      %v722 = vxor.u32 %v594, %v658
      %v723 = vxor.u32 %v595, %v659
      %v724 = vxor.u32 %v596, %v660
      %v725 = vxor.u32 %v597, %v661
      %v726 = vxor.u32 %v598, %v662
      %v727 = vxor.u32 %v599, %v663
      %v728 = vxor.u32 %v600, %v664
      %v729 = vxor.u32 %v601, %v665
      %v730 = vxor.u32 %v602, %v666
      %v731 = vxor.u32 %v603, %v667
      %v732 = vxor.u32 %v604, %v668
      %v733 = vxor.u32 %v605, %v669
      %v734 = vxor.u32 %v606, %v670
      %v735 = vxor.u32 %v607, %v671
      %v736 = vmul.u32 %v672, 2246822507
      %v737 = vmul.u32 %v673, 2246822507
      %v738 = vmul.u32 %v674, 2246822507
      %v739 = vmul.u32 %v675, 2246822507
      %v740 = vmul.u32 %v676, 2246822507
      %v741 = vmul.u32 %v677, 2246822507
      %v742 = vmul.u32 %v678, 2246822507
      %v743 = vmul.u32 %v679, 2246822507
      %v744 = vmul.u32 %v680, 2246822507
      %v745 = vmul.u32 %v681, 2246822507
      %v746 = vmul.u32 %v682, 2246822507
      %v747 = vmul.u32 %v683, 2246822507
      %v748 = vmul.u32 %v684, 2246822507
      %v749 = vmul.u32 %v685, 2246822507
      %v750 = vmul.u32 %v686, 2246822507
      %v751 = vmul.u32 %v687, 2246822507
      %v752 = vmul.u32 %v688, 2246822507
      %v753 = vmul.u32 %v689, 2246822507
      %v754 = vmul.u32 %v690, 2246822507
      %v755 = vmul.u32 %v691, 2246822507
      %v756 = vmul.u32 %v692, 2246822507
      %v757 = vmul.u32 %v693, 2246822507
      %v758 = vmul.u32 %v694, 2246822507
      %v759 = vmul.u32 %v695, 2246822507
      %v760 = vmul.u32 %v696, 2246822507
      %v761 = vmul.u32 %v697, 2246822507
      %v762 = vmul.u32 %v698, 2246822507
      %v763 = vmul.u32 %v699, 2246822507
      %v764 = vmul.u32 %v700, 2246822507
      %v765 = vmul.u32 %v701, 2246822507
      %v766 = vmul.u32 %v702, 2246822507
      %v767 = vmul.u32 %v703, 2246822507
      %v768 = vmul.u32 %v704, 2246822507
      %v769 = vmul.u32 %v705, 2246822507
      %v770 = vmul.u32 %v706, 2246822507
      %v771 = vmul.u32 %v707, 2246822507
      %v772 = vmul.u32 %v708, 2246822507
      %v773 = vmul.u32 %v709, 2246822507
      %v774 = vmul.u32 %v710, 2246822507
      %v775 = vmul.u32 %v711, 2246822507
      %v776 = vmul.u32 %v712, 2246822507
      %v777 = vmul.u32 %v713, 2246822507
      %v778 = vmul.u32 %v714, 2246822507
      %v779 = vmul.u32 %v715, 2246822507
      %v780 = vmul.u32 %v716, 2246822507
      %v781 = vmul.u32 %v717, 2246822507
      %v782 = vmul.u32 %v718, 2246822507
      %v783 = vmul.u32 %v719, 2246822507
      %v784 = vmul.u32 %v720, 2246822507
      %v785 = vmul.u32 %v721, 2246822507
      %v786 = vmul.u32 %v722, 2246822507
      %v787 = vmul.u32 %v723, 2246822507
      %v788 = vmul.u32 %v724, 2246822507
      %v789 = vmul.u32 %v725, 2246822507
      %v790 = vmul.u32 %v726, 2246822507
      %v791 = vmul.u32 %v727, 2246822507
      %v792 = vmul.u32 %v728, 2246822507
      %v793 = vmul.u32 %v729, 2246822507
      %v794 = vmul.u32 %v730, 2246822507
      %v795 = vmul.u32 %v731, 2246822507
      %v796 = vmul.u32 %v732, 2246822507
      %v797 = vmul.u32 %v733, 2246822507
      %v798 = vmul.u32 %v734, 2246822507
      %v799 = vmul.u32 %v735, 2246822507
      %v800 = vshrl.u32 %v736, 13
      %v801 = vshrl.u32 %v737, 13
      %v802 = vshrl.u32 %v738, 13
      %v803 = vshrl.u32 %v739, 13
      %v804 = vshrl.u32 %v740, 13
      %v805 = vshrl.u32 %v741, 13
      %v806 = vshrl.u32 %v742, 13
      %v807 = vshrl.u32 %v743, 13
      %v808 = vshrl.u32 %v744, 13
      %v809 = vshrl.u32 %v745, 13
      %v810 = vshrl.u32 %v746, 13
      %v811 = vshrl.u32 %v747, 13
      %v812 = vshrl.u32 %v748, 13
      %v813 = vshrl.u32 %v749, 13
      %v814 = vshrl.u32 %v750, 13
      %v815 = vshrl.u32 %v751, 13
      %v816 = vshrl.u32 %v752, 13
      %v817 = vshrl.u32 %v753, 13
      %v818 = vshrl.u32 %v754, 13
      %v819 = vshrl.u32 %v755, 13
      %v820 = vshrl.u32 %v756, 13
      %v821 = vshrl.u32 %v757, 13
      %v822 = vshrl.u32 %v758, 13
      %v823 = vshrl.u32 %v759, 13
      %v824 = vshrl.u32 %v760, 13
      %v825 = vshrl.u32 %v761, 13
      %v826 = vshrl.u32 %v762, 13
      %v827 = vshrl.u32 %v763, 13
      %v828 = vshrl.u32 %v764, 13
      %v829 = vshrl.u32 %v765, 13
      %v830 = vshrl.u32 %v766, 13
      %v831 = vshrl.u32 %v767, 13
      %v832 = vshrl.u32 %v768, 13
      %v833 = vshrl.u32 %v769, 13
      %v834 = vshrl.u32 %v770, 13
      %v835 = vshrl.u32 %v771, 13
      %v836 = vshrl.u32 %v772, 13
      %v837 = vshrl.u32 %v773, 13
      %v838 = vshrl.u32 %v774, 13
      %v839 = vshrl.u32 %v775, 13
      %v840 = vshrl.u32 %v776, 13
      %v841 = vshrl.u32 %v777, 13
      %v842 = vshrl.u32 %v778, 13
      %v843 = vshrl.u32 %v779, 13
      %v844 = vshrl.u32 %v780, 13
      %v845 = vshrl.u32 %v781, 13
      %v846 = vshrl.u32 %v782, 13
      %v847 = vshrl.u32 %v783, 13
      %v848 = vshrl.u32 %v784, 13
      %v849 = vshrl.u32 %v785, 13
      %v850 = vshrl.u32 %v786, 13
      %v851 = vshrl.u32 %v787, 13
      %v852 = vshrl.u32 %v788, 13
      %v853 = vshrl.u32 %v789, 13
      %v854 = vshrl.u32 %v790, 13
      %v855 = vshrl.u32 %v791, 13
      %v856 = vshrl.u32 %v792, 13
      %v857 = vshrl.u32 %v793, 13
      %v858 = vshrl.u32 %v794, 13
      %v859 = vshrl.u32 %v795, 13
      %v860 = vshrl.u32 %v796, 13
      %v861 = vshrl.u32 %v797, 13
      %v862 = vshrl.u32 %v798, 13
      %v863 = vshrl.u32 %v799, 13
      %v864 = vxor.u32 %v736, %v800
      %v865 = vxor.u32 %v737, %v801
      %v866 = vxor.u32 %v738, %v802
      %v867 = vxor.u32 %v739, %v803
      %v868 = vxor.u32 %v740, %v804
      %v869 = vxor.u32 %v741, %v805
      %v870 = vxor.u32 %v742, %v806
      %v871 = vxor.u32 %v743, %v807
      %v872 = vxor.u32 %v744, %v808
      %v873 = vxor.u32 %v745, %v809
      %v874 = vxor.u32 %v746, %v810
      %v875 = vxor.u32 %v747, %v811
      %v876 = vxor.u32 %v748, %v812
      %v877 = vxor.u32 %v749, %v813
      %v878 = vxor.u32 %v750, %v814
      %v879 = vxor.u32 %v751, %v815
      %v880 = vxor.u32 %v752, %v816
      %v881 = vxor.u32 %v753, %v817
      %v882 = vxor.u32 %v754, %v818
      %v883 = vxor.u32 %v755, %v819
      %v884 = vxor.u32 %v756, %v820
      %v885 = vxor.u32 %v757, %v821
      %v886 = vxor.u32 %v758, %v822
      %v887 = vxor.u32 %v759, %v823
      %v888 = vxor.u32 %v760, %v824
      %v889 = vxor.u32 %v761, %v825
      %v890 = vxor.u32 %v762, %v826
      %v891 = vxor.u32 %v763, %v827
      %v892 = vxor.u32 %v764, %v828
      %v893 = vxor.u32 %v765, %v829
      %v894 = vxor.u32 %v766, %v830
      %v895 = vxor.u32 %v767, %v831
      %v896 = vxor.u32 %v768, %v832
      %v897 = vxor.u32 %v769, %v833
      %v898 = vxor.u32 %v770, %v834
      %v899 = vxor.u32 %v771, %v835
      %v900 = vxor.u32 %v772, %v836
      %v901 = vxor.u32 %v773, %v837
      %v902 = vxor.u32 %v774, %v838
      %v903 = vxor.u32 %v775, %v839
      %v904 = vxor.u32 %v776, %v840
      %v905 = vxor.u32 %v777, %v841
      %v906 = vxor.u32 %v778, %v842
      %v907 = vxor.u32 %v779, %v843
      %v908 = vxor.u32 %v780, %v844
      %v909 = vxor.u32 %v781, %v845
      %v910 = vxor.u32 %v782, %v846
      %v911 = vxor.u32 %v783, %v847
      %v912 = vxor.u32 %v784, %v848
      %v913 = vxor.u32 %v785, %v849
      %v914 = vxor.u32 %v786, %v850
      %v915 = vxor.u32 %v787, %v851
      %v916 = vxor.u32 %v788, %v852
      %v917 = vxor.u32 %v789, %v853
      %v918 = vxor.u32 %v790, %v854
      %v919 = vxor.u32 %v791, %v855
      %v920 = vxor.u32 %v792, %v856
      %v921 = vxor.u32 %v793, %v857
      %v922 = vxor.u32 %v794, %v858
      %v923 = vxor.u32 %v795, %v859
      %v924 = vxor.u32 %v796, %v860
      %v925 = vxor.u32 %v797, %v861
      %v926 = vxor.u32 %v798, %v862
      %v927 = vxor.u32 %v799, %v863
      %v928 = vmul.u32 %v864, 3266489909
      %v929 = vmul.u32 %v865, 3266489909
      %v930 = vmul.u32 %v866, 3266489909
      %v931 = vmul.u32 %v867, 3266489909
      %v932 = vmul.u32 %v868, 3266489909
      %v933 = vmul.u32 %v869, 3266489909
      %v934 = vmul.u32 %v870, 3266489909
      %v935 = vmul.u32 %v871, 3266489909
      %v936 = vmul.u32 %v872, 3266489909
      %v937 = vmul.u32 %v873, 3266489909
      %v938 = vmul.u32 %v874, 3266489909
      %v939 = vmul.u32 %v875, 3266489909
      %v940 = vmul.u32 %v876, 3266489909
      %v941 = vmul.u32 %v877, 3266489909
      %v942 = vmul.u32 %v878, 3266489909
      %v943 = vmul.u32 %v879, 3266489909
      %v944 = vmul.u32 %v880, 3266489909
      %v945 = vmul.u32 %v881, 3266489909
      %v946 = vmul.u32 %v882, 3266489909
      %v947 = vmul.u32 %v883, 3266489909
      %v948 = vmul.u32 %v884, 3266489909
      %v949 = vmul.u32 %v885, 3266489909
      %v950 = vmul.u32 %v886, 3266489909
      %v951 = vmul.u32 %v887, 3266489909
      %v952 = vmul.u32 %v888, 3266489909
      %v953 = vmul.u32 %v889, 3266489909
      %v954 = vmul.u32 %v890, 3266489909
      %v955 = vmul.u32 %v891, 3266489909
      %v956 = vmul.u32 %v892, 3266489909
      %v957 = vmul.u32 %v893, 3266489909
      %v958 = vmul.u32 %v894, 3266489909
      %v959 = vmul.u32 %v895, 3266489909
      %v960 = vmul.u32 %v896, 3266489909
      %v961 = vmul.u32 %v897, 3266489909
      %v962 = vmul.u32 %v898, 3266489909
      %v963 = vmul.u32 %v899, 3266489909
      %v964 = vmul.u32 %v900, 3266489909
      %v965 = vmul.u32 %v901, 3266489909
      %v966 = vmul.u32 %v902, 3266489909
      %v967 = vmul.u32 %v903, 3266489909
      %v968 = vmul.u32 %v904, 3266489909
      %v969 = vmul.u32 %v905, 3266489909
      %v970 = vmul.u32 %v906, 3266489909
      %v971 = vmul.u32 %v907, 3266489909
      %v972 = vmul.u32 %v908, 3266489909
      %v973 = vmul.u32 %v909, 3266489909
      %v974 = vmul.u32 %v910, 3266489909
      %v975 = vmul.u32 %v911, 3266489909
      %v976 = vmul.u32 %v912, 3266489909
      %v977 = vmul.u32 %v913, 3266489909
      %v978 = vmul.u32 %v914, 3266489909
      %v979 = vmul.u32 %v915, 3266489909
      %v980 = vmul.u32 %v916, 3266489909
      %v981 = vmul.u32 %v917, 3266489909
      %v982 = vmul.u32 %v918, 3266489909
      %v983 = vmul.u32 %v919, 3266489909
      %v984 = vmul.u32 %v920, 3266489909
      %v985 = vmul.u32 %v921, 3266489909
      %v986 = vmul.u32 %v922, 3266489909
      %v987 = vmul.u32 %v923, 3266489909
      %v988 = vmul.u32 %v924, 3266489909
      %v989 = vmul.u32 %v925, 3266489909
      %v990 = vmul.u32 %v926, 3266489909
      %v991 = vmul.u32 %v927, 3266489909
      %v992 = vshrl.u32 %v928, 16
      %v993 = vshrl.u32 %v929, 16
      %v994 = vshrl.u32 %v930, 16
      %v995 = vshrl.u32 %v931, 16
      %v996 = vshrl.u32 %v932, 16
      %v997 = vshrl.u32 %v933, 16
      %v998 = vshrl.u32 %v934, 16
      %v999 = vshrl.u32 %v935, 16
      %v1000 = vshrl.u32 %v936, 16
      %v1001 = vshrl.u32 %v937, 16
      %v1002 = vshrl.u32 %v938, 16
      %v1003 = vshrl.u32 %v939, 16
      %v1004 = vshrl.u32 %v940, 16
      %v1005 = vshrl.u32 %v941, 16
      %v1006 = vshrl.u32 %v942, 16
      %v1007 = vshrl.u32 %v943, 16
      %v1008 = vshrl.u32 %v944, 16
      %v1009 = vshrl.u32 %v945, 16
      %v1010 = vshrl.u32 %v946, 16
      %v1011 = vshrl.u32 %v947, 16
      %v1012 = vshrl.u32 %v948, 16
      %v1013 = vshrl.u32 %v949, 16
      %v1014 = vshrl.u32 %v950, 16
      %v1015 = vshrl.u32 %v951, 16
      %v1016 = vshrl.u32 %v952, 16
      %v1017 = vshrl.u32 %v953, 16
      %v1018 = vshrl.u32 %v954, 16
      %v1019 = vshrl.u32 %v955, 16
      %v1020 = vshrl.u32 %v956, 16
      %v1021 = vshrl.u32 %v957, 16
      %v1022 = vshrl.u32 %v958, 16
      %v1023 = vshrl.u32 %v959, 16
      %v1024 = vshrl.u32 %v960, 16
      %v1025 = vshrl.u32 %v961, 16
      %v1026 = vshrl.u32 %v962, 16
      %v1027 = vshrl.u32 %v963, 16
      %v1028 = vshrl.u32 %v964, 16
      %v1029 = vshrl.u32 %v965, 16
      %v1030 = vshrl.u32 %v966, 16
      %v1031 = vshrl.u32 %v967, 16
      %v1032 = vshrl.u32 %v968, 16
      %v1033 = vshrl.u32 %v969, 16
      %v1034 = vshrl.u32 %v970, 16
      %v1035 = vshrl.u32 %v971, 16
      %v1036 = vshrl.u32 %v972, 16
      %v1037 = vshrl.u32 %v973, 16
      %v1038 = vshrl.u32 %v974, 16
      %v1039 = vshrl.u32 %v975, 16
      %v1040 = vshrl.u32 %v976, 16
      %v1041 = vshrl.u32 %v977, 16
      %v1042 = vshrl.u32 %v978, 16
      %v1043 = vshrl.u32 %v979, 16
      %v1044 = vshrl.u32 %v980, 16
      %v1045 = vshrl.u32 %v981, 16
      %v1046 = vshrl.u32 %v982, 16
      %v1047 = vshrl.u32 %v983, 16
      %v1048 = vshrl.u32 %v984, 16
      %v1049 = vshrl.u32 %v985, 16
      %v1050 = vshrl.u32 %v986, 16
      %v1051 = vshrl.u32 %v987, 16
      %v1052 = vshrl.u32 %v988, 16
      %v1053 = vshrl.u32 %v989, 16
      %v1054 = vshrl.u32 %v990, 16
      %v1055 = vshrl.u32 %v991, 16
      %v1056 = vxor.u32 %v928, %v992
      %v1057 = vxor.u32 %v929, %v993
      %v1058 = vxor.u32 %v930, %v994
      %v1059 = vxor.u32 %v931, %v995
      %v1060 = vxor.u32 %v932, %v996
      %v1061 = vxor.u32 %v933, %v997
      %v1062 = vxor.u32 %v934, %v998
      %v1063 = vxor.u32 %v935, %v999
      %v1064 = vxor.u32 %v936, %v1000
      %v1065 = vxor.u32 %v937, %v1001
      %v1066 = vxor.u32 %v938, %v1002
      %v1067 = vxor.u32 %v939, %v1003
      %v1068 = vxor.u32 %v940, %v1004
      %v1069 = vxor.u32 %v941, %v1005
      %v1070 = vxor.u32 %v942, %v1006
      %v1071 = vxor.u32 %v943, %v1007
      %v1072 = vxor.u32 %v944, %v1008
      %v1073 = vxor.u32 %v945, %v1009
      %v1074 = vxor.u32 %v946, %v1010
      %v1075 = vxor.u32 %v947, %v1011
      %v1076 = vxor.u32 %v948, %v1012
      %v1077 = vxor.u32 %v949, %v1013
      %v1078 = vxor.u32 %v950, %v1014
      %v1079 = vxor.u32 %v951, %v1015
      %v1080 = vxor.u32 %v952, %v1016
      %v1081 = vxor.u32 %v953, %v1017
      %v1082 = vxor.u32 %v954, %v1018
      %v1083 = vxor.u32 %v955, %v1019
      %v1084 = vxor.u32 %v956, %v1020
      %v1085 = vxor.u32 %v957, %v1021
      %v1086 = vxor.u32 %v958, %v1022
      %v1087 = vxor.u32 %v959, %v1023
      %v1088 = vxor.u32 %v960, %v1024
      %v1089 = vxor.u32 %v961, %v1025
      %v1090 = vxor.u32 %v962, %v1026
      %v1091 = vxor.u32 %v963, %v1027
      %v1092 = vxor.u32 %v964, %v1028
      %v1093 = vxor.u32 %v965, %v1029
      %v1094 = vxor.u32 %v966, %v1030
      %v1095 = vxor.u32 %v967, %v1031
      %v1096 = vxor.u32 %v968, %v1032
      %v1097 = vxor.u32 %v969, %v1033
      %v1098 = vxor.u32 %v970, %v1034
      %v1099 = vxor.u32 %v971, %v1035
      %v1100 = vxor.u32 %v972, %v1036
      %v1101 = vxor.u32 %v973, %v1037
      %v1102 = vxor.u32 %v974, %v1038
      %v1103 = vxor.u32 %v975, %v1039
      %v1104 = vxor.u32 %v976, %v1040
      %v1105 = vxor.u32 %v977, %v1041
      %v1106 = vxor.u32 %v978, %v1042
      %v1107 = vxor.u32 %v979, %v1043
      %v1108 = vxor.u32 %v980, %v1044
      %v1109 = vxor.u32 %v981, %v1045
      %v1110 = vxor.u32 %v982, %v1046
      %v1111 = vxor.u32 %v983, %v1047
      %v1112 = vxor.u32 %v984, %v1048
      %v1113 = vxor.u32 %v985, %v1049
      %v1114 = vxor.u32 %v986, %v1050
      %v1115 = vxor.u32 %v987, %v1051
      %v1116 = vxor.u32 %v988, %v1052
      %v1117 = vxor.u32 %v989, %v1053
      %v1118 = vxor.u32 %v990, %v1054
      %v1119 = vxor.u32 %v991, %v1055
      %vm1120 = vcmp.gt.s32.totalorder %v1056, 1288490188
      %vm1121 = vcmp.gt.s32.totalorder %v1057, 1288490188
      %vm1122 = vcmp.gt.s32.totalorder %v1058, 1288490188
      %vm1123 = vcmp.gt.s32.totalorder %v1059, 1288490188
      %vm1124 = vcmp.gt.s32.totalorder %v1060, 1288490188
      %vm1125 = vcmp.gt.s32.totalorder %v1061, 1288490188
      %vm1126 = vcmp.gt.s32.totalorder %v1062, 1288490188
      %vm1127 = vcmp.gt.s32.totalorder %v1063, 1288490188
      %vm1128 = vcmp.gt.s32.totalorder %v1064, 1288490188
      %vm1129 = vcmp.gt.s32.totalorder %v1065, 1288490188
      %vm1130 = vcmp.gt.s32.totalorder %v1066, 1288490188
      %vm1131 = vcmp.gt.s32.totalorder %v1067, 1288490188
      %vm1132 = vcmp.gt.s32.totalorder %v1068, 1288490188
      %vm1133 = vcmp.gt.s32.totalorder %v1069, 1288490188
      %vm1134 = vcmp.gt.s32.totalorder %v1070, 1288490188
      %vm1135 = vcmp.gt.s32.totalorder %v1071, 1288490188
      %vm1136 = vcmp.gt.s32.totalorder %v1072, 1288490188
      %vm1137 = vcmp.gt.s32.totalorder %v1073, 1288490188
      %vm1138 = vcmp.gt.s32.totalorder %v1074, 1288490188
      %vm1139 = vcmp.gt.s32.totalorder %v1075, 1288490188
      %vm1140 = vcmp.gt.s32.totalorder %v1076, 1288490188
      %vm1141 = vcmp.gt.s32.totalorder %v1077, 1288490188
      %vm1142 = vcmp.gt.s32.totalorder %v1078, 1288490188
      %vm1143 = vcmp.gt.s32.totalorder %v1079, 1288490188
      %vm1144 = vcmp.gt.s32.totalorder %v1080, 1288490188
      %vm1145 = vcmp.gt.s32.totalorder %v1081, 1288490188
      %vm1146 = vcmp.gt.s32.totalorder %v1082, 1288490188
      %vm1147 = vcmp.gt.s32.totalorder %v1083, 1288490188
      %vm1148 = vcmp.gt.s32.totalorder %v1084, 1288490188
      %vm1149 = vcmp.gt.s32.totalorder %v1085, 1288490188
      %vm1150 = vcmp.gt.s32.totalorder %v1086, 1288490188
      %vm1151 = vcmp.gt.s32.totalorder %v1087, 1288490188
      %vm1152 = vcmp.gt.s32.totalorder %v1088, 1288490188
      %vm1153 = vcmp.gt.s32.totalorder %v1089, 1288490188
      %vm1154 = vcmp.gt.s32.totalorder %v1090, 1288490188
      %vm1155 = vcmp.gt.s32.totalorder %v1091, 1288490188
      %vm1156 = vcmp.gt.s32.totalorder %v1092, 1288490188
      %vm1157 = vcmp.gt.s32.totalorder %v1093, 1288490188
      %vm1158 = vcmp.gt.s32.totalorder %v1094, 1288490188
      %vm1159 = vcmp.gt.s32.totalorder %v1095, 1288490188
      %vm1160 = vcmp.gt.s32.totalorder %v1096, 1288490188
      %vm1161 = vcmp.gt.s32.totalorder %v1097, 1288490188
      %vm1162 = vcmp.gt.s32.totalorder %v1098, 1288490188
      %vm1163 = vcmp.gt.s32.totalorder %v1099, 1288490188
      %vm1164 = vcmp.gt.s32.totalorder %v1100, 1288490188
      %vm1165 = vcmp.gt.s32.totalorder %v1101, 1288490188
      %vm1166 = vcmp.gt.s32.totalorder %v1102, 1288490188
      %vm1167 = vcmp.gt.s32.totalorder %v1103, 1288490188
      %vm1168 = vcmp.gt.s32.totalorder %v1104, 1288490188
      %vm1169 = vcmp.gt.s32.totalorder %v1105, 1288490188
      %vm1170 = vcmp.gt.s32.totalorder %v1106, 1288490188
      %vm1171 = vcmp.gt.s32.totalorder %v1107, 1288490188
      %vm1172 = vcmp.gt.s32.totalorder %v1108, 1288490188
      %vm1173 = vcmp.gt.s32.totalorder %v1109, 1288490188
      %vm1174 = vcmp.gt.s32.totalorder %v1110, 1288490188
      %vm1175 = vcmp.gt.s32.totalorder %v1111, 1288490188
      %vm1176 = vcmp.gt.s32.totalorder %v1112, 1288490188
      %vm1177 = vcmp.gt.s32.totalorder %v1113, 1288490188
      %vm1178 = vcmp.gt.s32.totalorder %v1114, 1288490188
      %vm1179 = vcmp.gt.s32.totalorder %v1115, 1288490188
      %vm1180 = vcmp.gt.s32.totalorder %v1116, 1288490188
      %vm1181 = vcmp.gt.s32.totalorder %v1117, 1288490188
      %vm1182 = vcmp.gt.s32.totalorder %v1118, 1288490188
      %vm1183 = vcmp.gt.s32.totalorder %v1119, 1288490188
      %v1184 = vsel %vm1120, 1, 0
      %v1185 = vsel %vm1121, 1, 0
      %v1186 = vsel %vm1122, 1, 0
      %v1187 = vsel %vm1123, 1, 0
      %v1188 = vsel %vm1124, 1, 0
      %v1189 = vsel %vm1125, 1, 0
      %v1190 = vsel %vm1126, 1, 0
      %v1191 = vsel %vm1127, 1, 0
      %v1192 = vsel %vm1128, 1, 0
      %v1193 = vsel %vm1129, 1, 0
      %v1194 = vsel %vm1130, 1, 0
      %v1195 = vsel %vm1131, 1, 0
      %v1196 = vsel %vm1132, 1, 0
      %v1197 = vsel %vm1133, 1, 0
      %v1198 = vsel %vm1134, 1, 0
      %v1199 = vsel %vm1135, 1, 0
      %v1200 = vsel %vm1136, 1, 0
      %v1201 = vsel %vm1137, 1, 0
      %v1202 = vsel %vm1138, 1, 0
      %v1203 = vsel %vm1139, 1, 0
      %v1204 = vsel %vm1140, 1, 0
      %v1205 = vsel %vm1141, 1, 0
      %v1206 = vsel %vm1142, 1, 0
      %v1207 = vsel %vm1143, 1, 0
      %v1208 = vsel %vm1144, 1, 0
      %v1209 = vsel %vm1145, 1, 0
      %v1210 = vsel %vm1146, 1, 0
      %v1211 = vsel %vm1147, 1, 0
      %v1212 = vsel %vm1148, 1, 0
      %v1213 = vsel %vm1149, 1, 0
      %v1214 = vsel %vm1150, 1, 0
      %v1215 = vsel %vm1151, 1, 0
      %v1216 = vsel %vm1152, 1, 0
      %v1217 = vsel %vm1153, 1, 0
      %v1218 = vsel %vm1154, 1, 0
      %v1219 = vsel %vm1155, 1, 0
      %v1220 = vsel %vm1156, 1, 0
      %v1221 = vsel %vm1157, 1, 0
      %v1222 = vsel %vm1158, 1, 0
      %v1223 = vsel %vm1159, 1, 0
      %v1224 = vsel %vm1160, 1, 0
      %v1225 = vsel %vm1161, 1, 0
      %v1226 = vsel %vm1162, 1, 0
      %v1227 = vsel %vm1163, 1, 0
      %v1228 = vsel %vm1164, 1, 0
      %v1229 = vsel %vm1165, 1, 0
      %v1230 = vsel %vm1166, 1, 0
      %v1231 = vsel %vm1167, 1, 0
      %v1232 = vsel %vm1168, 1, 0
      %v1233 = vsel %vm1169, 1, 0
      %v1234 = vsel %vm1170, 1, 0
      %v1235 = vsel %vm1171, 1, 0
      %v1236 = vsel %vm1172, 1, 0
      %v1237 = vsel %vm1173, 1, 0
      %v1238 = vsel %vm1174, 1, 0
      %v1239 = vsel %vm1175, 1, 0
      %v1240 = vsel %vm1176, 1, 0
      %v1241 = vsel %vm1177, 1, 0
      %v1242 = vsel %vm1178, 1, 0
      %v1243 = vsel %vm1179, 1, 0
      %v1244 = vsel %vm1180, 1, 0
      %v1245 = vsel %vm1181, 1, 0
      %v1246 = vsel %vm1182, 1, 0
      %v1247 = vsel %vm1183, 1, 0
      %v1248 = vcvt.s32.f32 %v1184
      %v1249 = vcvt.s32.f32 %v1185
      %v1250 = vcvt.s32.f32 %v1186
      %v1251 = vcvt.s32.f32 %v1187
      %v1252 = vcvt.s32.f32 %v1188
      %v1253 = vcvt.s32.f32 %v1189
      %v1254 = vcvt.s32.f32 %v1190
      %v1255 = vcvt.s32.f32 %v1191
      %v1256 = vcvt.s32.f32 %v1192
      %v1257 = vcvt.s32.f32 %v1193
      %v1258 = vcvt.s32.f32 %v1194
      %v1259 = vcvt.s32.f32 %v1195
      %v1260 = vcvt.s32.f32 %v1196
      %v1261 = vcvt.s32.f32 %v1197
      %v1262 = vcvt.s32.f32 %v1198
      %v1263 = vcvt.s32.f32 %v1199
      %v1264 = vcvt.s32.f32 %v1200
      %v1265 = vcvt.s32.f32 %v1201
      %v1266 = vcvt.s32.f32 %v1202
      %v1267 = vcvt.s32.f32 %v1203
      %v1268 = vcvt.s32.f32 %v1204
      %v1269 = vcvt.s32.f32 %v1205
      %v1270 = vcvt.s32.f32 %v1206
      %v1271 = vcvt.s32.f32 %v1207
      %v1272 = vcvt.s32.f32 %v1208
      %v1273 = vcvt.s32.f32 %v1209
      %v1274 = vcvt.s32.f32 %v1210
      %v1275 = vcvt.s32.f32 %v1211
      %v1276 = vcvt.s32.f32 %v1212
      %v1277 = vcvt.s32.f32 %v1213
      %v1278 = vcvt.s32.f32 %v1214
      %v1279 = vcvt.s32.f32 %v1215
      %v1280 = vcvt.s32.f32 %v1216
      %v1281 = vcvt.s32.f32 %v1217
      %v1282 = vcvt.s32.f32 %v1218
      %v1283 = vcvt.s32.f32 %v1219
      %v1284 = vcvt.s32.f32 %v1220
      %v1285 = vcvt.s32.f32 %v1221
      %v1286 = vcvt.s32.f32 %v1222
      %v1287 = vcvt.s32.f32 %v1223
      %v1288 = vcvt.s32.f32 %v1224
      %v1289 = vcvt.s32.f32 %v1225
      %v1290 = vcvt.s32.f32 %v1226
      %v1291 = vcvt.s32.f32 %v1227
      %v1292 = vcvt.s32.f32 %v1228
      %v1293 = vcvt.s32.f32 %v1229
      %v1294 = vcvt.s32.f32 %v1230
      %v1295 = vcvt.s32.f32 %v1231
      %v1296 = vcvt.s32.f32 %v1232
      %v1297 = vcvt.s32.f32 %v1233
      %v1298 = vcvt.s32.f32 %v1234
      %v1299 = vcvt.s32.f32 %v1235
      %v1300 = vcvt.s32.f32 %v1236
      %v1301 = vcvt.s32.f32 %v1237
      %v1302 = vcvt.s32.f32 %v1238
      %v1303 = vcvt.s32.f32 %v1239
      %v1304 = vcvt.s32.f32 %v1240
      %v1305 = vcvt.s32.f32 %v1241
      %v1306 = vcvt.s32.f32 %v1242
      %v1307 = vcvt.s32.f32 %v1243
      %v1308 = vcvt.s32.f32 %v1244
      %v1309 = vcvt.s32.f32 %v1245
      %v1310 = vcvt.s32.f32 %v1246
      %v1311 = vcvt.s32.f32 %v1247
      %v1312 = vmul.f32 %v217, %v1248
      %v1313 = vmul.f32 %v218, %v1249
      %v1314 = vmul.f32 %v219, %v1250
      %v1315 = vmul.f32 %v220, %v1251
      %v1316 = vmul.f32 %v221, %v1252
      %v1317 = vmul.f32 %v222, %v1253
      %v1318 = vmul.f32 %v223, %v1254
      %v1319 = vmul.f32 %v224, %v1255
      %v1320 = vmul.f32 %v225, %v1256
      %v1321 = vmul.f32 %v226, %v1257
      %v1322 = vmul.f32 %v227, %v1258
      %v1323 = vmul.f32 %v228, %v1259
      %v1324 = vmul.f32 %v229, %v1260
      %v1325 = vmul.f32 %v230, %v1261
      %v1326 = vmul.f32 %v231, %v1262
      %v1327 = vmul.f32 %v232, %v1263
      %v1328 = vmul.f32 %v233, %v1264
      %v1329 = vmul.f32 %v234, %v1265
      %v1330 = vmul.f32 %v235, %v1266
      %v1331 = vmul.f32 %v236, %v1267
      %v1332 = vmul.f32 %v237, %v1268
      %v1333 = vmul.f32 %v238, %v1269
      %v1334 = vmul.f32 %v239, %v1270
      %v1335 = vmul.f32 %v240, %v1271
      %v1336 = vmul.f32 %v241, %v1272
      %v1337 = vmul.f32 %v242, %v1273
      %v1338 = vmul.f32 %v243, %v1274
      %v1339 = vmul.f32 %v244, %v1275
      %v1340 = vmul.f32 %v245, %v1276
      %v1341 = vmul.f32 %v246, %v1277
      %v1342 = vmul.f32 %v247, %v1278
      %v1343 = vmul.f32 %v248, %v1279
      %v1344 = vmul.f32 %v249, %v1280
      %v1345 = vmul.f32 %v250, %v1281
      %v1346 = vmul.f32 %v251, %v1282
      %v1347 = vmul.f32 %v252, %v1283
      %v1348 = vmul.f32 %v253, %v1284
      %v1349 = vmul.f32 %v254, %v1285
      %v1350 = vmul.f32 %v255, %v1286
      %v1351 = vmul.f32 %v256, %v1287
      %v1352 = vmul.f32 %v257, %v1288
      %v1353 = vmul.f32 %v258, %v1289
      %v1354 = vmul.f32 %v259, %v1290
      %v1355 = vmul.f32 %v260, %v1291
      %v1356 = vmul.f32 %v261, %v1292
      %v1357 = vmul.f32 %v262, %v1293
      %v1358 = vmul.f32 %v263, %v1294
      %v1359 = vmul.f32 %v264, %v1295
      %v1360 = vmul.f32 %v265, %v1296
      %v1361 = vmul.f32 %v266, %v1297
      %v1362 = vmul.f32 %v267, %v1298
      %v1363 = vmul.f32 %v268, %v1299
      %v1364 = vmul.f32 %v269, %v1300
      %v1365 = vmul.f32 %v270, %v1301
      %v1366 = vmul.f32 %v271, %v1302
      %v1367 = vmul.f32 %v272, %v1303
      %v1368 = vmul.f32 %v273, %v1304
      %v1369 = vmul.f32 %v274, %v1305
      %v1370 = vmul.f32 %v275, %v1306
      %v1371 = vmul.f32 %v276, %v1307
      %v1372 = vmul.f32 %v277, %v1308
      %v1373 = vmul.f32 %v278, %v1309
      %v1374 = vmul.f32 %v279, %v1310
      %v1375 = vmul.f32 %v280, %v1311
      %vm1376 = vcmask 261120
      %v1377 = vsel %vm1376, %v217, 0.0
      %v1378 = vrot.slane %v1377, 4
      %v1379 = vadd.f32 %v1377, %v1378
      %v1380 = vrot.slane %v1379, 2
      %v1381 = vadd.f32 %v1379, %v1380
      %v1382 = vrot.slane %v1381, 1
      %v1383 = vadd.f32 %v1381, %v1382
      %v1384 = vsel %vm1376, %v218, 0.0
      %v1385 = vrot.slane %v1384, 4
      %v1386 = vadd.f32 %v1384, %v1385
      %v1387 = vrot.slane %v1386, 2
      %v1388 = vadd.f32 %v1386, %v1387
      %v1389 = vrot.slane %v1388, 1
      %v1390 = vadd.f32 %v1388, %v1389
      %v1391 = vsel %vm1376, %v219, 0.0
      %v1392 = vrot.slane %v1391, 4
      %v1393 = vadd.f32 %v1391, %v1392
      %v1394 = vrot.slane %v1393, 2
      %v1395 = vadd.f32 %v1393, %v1394
      %v1396 = vrot.slane %v1395, 1
      %v1397 = vadd.f32 %v1395, %v1396
      %v1398 = vsel %vm1376, %v220, 0.0
      %v1399 = vrot.slane %v1398, 4
      %v1400 = vadd.f32 %v1398, %v1399
      %v1401 = vrot.slane %v1400, 2
      %v1402 = vadd.f32 %v1400, %v1401
      %v1403 = vrot.slane %v1402, 1
      %v1404 = vadd.f32 %v1402, %v1403
      %v1405 = vsel %vm1376, %v221, 0.0
      %v1406 = vrot.slane %v1405, 4
      %v1407 = vadd.f32 %v1405, %v1406
      %v1408 = vrot.slane %v1407, 2
      %v1409 = vadd.f32 %v1407, %v1408
      %v1410 = vrot.slane %v1409, 1
      %v1411 = vadd.f32 %v1409, %v1410
      %v1412 = vsel %vm1376, %v222, 0.0
      %v1413 = vrot.slane %v1412, 4
      %v1414 = vadd.f32 %v1412, %v1413
      %v1415 = vrot.slane %v1414, 2
      %v1416 = vadd.f32 %v1414, %v1415
      %v1417 = vrot.slane %v1416, 1
      %v1418 = vadd.f32 %v1416, %v1417
      %v1419 = vsel %vm1376, %v223, 0.0
      %v1420 = vrot.slane %v1419, 4
      %v1421 = vadd.f32 %v1419, %v1420
      %v1422 = vrot.slane %v1421, 2
      %v1423 = vadd.f32 %v1421, %v1422
      %v1424 = vrot.slane %v1423, 1
      %v1425 = vadd.f32 %v1423, %v1424
      %v1426 = vsel %vm1376, %v224, 0.0
      %v1427 = vrot.slane %v1426, 4
      %v1428 = vadd.f32 %v1426, %v1427
      %v1429 = vrot.slane %v1428, 2
      %v1430 = vadd.f32 %v1428, %v1429
      %v1431 = vrot.slane %v1430, 1
      %v1432 = vadd.f32 %v1430, %v1431
      %v1433 = vsel %vm1376, %v225, 0.0
      %v1434 = vrot.slane %v1433, 4
      %v1435 = vadd.f32 %v1433, %v1434
      %v1436 = vrot.slane %v1435, 2
      %v1437 = vadd.f32 %v1435, %v1436
      %v1438 = vrot.slane %v1437, 1
      %v1439 = vadd.f32 %v1437, %v1438
      %v1440 = vsel %vm1376, %v226, 0.0
      %v1441 = vrot.slane %v1440, 4
      %v1442 = vadd.f32 %v1440, %v1441
      %v1443 = vrot.slane %v1442, 2
      %v1444 = vadd.f32 %v1442, %v1443
      %v1445 = vrot.slane %v1444, 1
      %v1446 = vadd.f32 %v1444, %v1445
      %v1447 = vsel %vm1376, %v227, 0.0
      %v1448 = vrot.slane %v1447, 4
      %v1449 = vadd.f32 %v1447, %v1448
      %v1450 = vrot.slane %v1449, 2
      %v1451 = vadd.f32 %v1449, %v1450
      %v1452 = vrot.slane %v1451, 1
      %v1453 = vadd.f32 %v1451, %v1452
      %v1454 = vsel %vm1376, %v228, 0.0
      %v1455 = vrot.slane %v1454, 4
      %v1456 = vadd.f32 %v1454, %v1455
      %v1457 = vrot.slane %v1456, 2
      %v1458 = vadd.f32 %v1456, %v1457
      %v1459 = vrot.slane %v1458, 1
      %v1460 = vadd.f32 %v1458, %v1459
      %v1461 = vsel %vm1376, %v229, 0.0
      %v1462 = vrot.slane %v1461, 4
      %v1463 = vadd.f32 %v1461, %v1462
      %v1464 = vrot.slane %v1463, 2
      %v1465 = vadd.f32 %v1463, %v1464
      %v1466 = vrot.slane %v1465, 1
      %v1467 = vadd.f32 %v1465, %v1466
      %v1468 = vsel %vm1376, %v230, 0.0
      %v1469 = vrot.slane %v1468, 4
      %v1470 = vadd.f32 %v1468, %v1469
      %v1471 = vrot.slane %v1470, 2
      %v1472 = vadd.f32 %v1470, %v1471
      %v1473 = vrot.slane %v1472, 1
      %v1474 = vadd.f32 %v1472, %v1473
      %v1475 = vsel %vm1376, %v231, 0.0
      %v1476 = vrot.slane %v1475, 4
      %v1477 = vadd.f32 %v1475, %v1476
      %v1478 = vrot.slane %v1477, 2
      %v1479 = vadd.f32 %v1477, %v1478
      %v1480 = vrot.slane %v1479, 1
      %v1481 = vadd.f32 %v1479, %v1480
      %v1482 = vsel %vm1376, %v232, 0.0
      %v1483 = vrot.slane %v1482, 4
      %v1484 = vadd.f32 %v1482, %v1483
      %v1485 = vrot.slane %v1484, 2
      %v1486 = vadd.f32 %v1484, %v1485
      %v1487 = vrot.slane %v1486, 1
      %v1488 = vadd.f32 %v1486, %v1487
      %v1489 = vsel %vm1376, %v233, 0.0
      %v1490 = vrot.slane %v1489, 4
      %v1491 = vadd.f32 %v1489, %v1490
      %v1492 = vrot.slane %v1491, 2
      %v1493 = vadd.f32 %v1491, %v1492
      %v1494 = vrot.slane %v1493, 1
      %v1495 = vadd.f32 %v1493, %v1494
      %v1496 = vsel %vm1376, %v234, 0.0
      %v1497 = vrot.slane %v1496, 4
      %v1498 = vadd.f32 %v1496, %v1497
      %v1499 = vrot.slane %v1498, 2
      %v1500 = vadd.f32 %v1498, %v1499
      %v1501 = vrot.slane %v1500, 1
      %v1502 = vadd.f32 %v1500, %v1501
      %v1503 = vsel %vm1376, %v235, 0.0
      %v1504 = vrot.slane %v1503, 4
      %v1505 = vadd.f32 %v1503, %v1504
      %v1506 = vrot.slane %v1505, 2
      %v1507 = vadd.f32 %v1505, %v1506
      %v1508 = vrot.slane %v1507, 1
      %v1509 = vadd.f32 %v1507, %v1508
      %v1510 = vsel %vm1376, %v236, 0.0
      %v1511 = vrot.slane %v1510, 4
      %v1512 = vadd.f32 %v1510, %v1511
      %v1513 = vrot.slane %v1512, 2
      %v1514 = vadd.f32 %v1512, %v1513
      %v1515 = vrot.slane %v1514, 1
      %v1516 = vadd.f32 %v1514, %v1515
      %v1517 = vsel %vm1376, %v237, 0.0
      %v1518 = vrot.slane %v1517, 4
      %v1519 = vadd.f32 %v1517, %v1518
      %v1520 = vrot.slane %v1519, 2
      %v1521 = vadd.f32 %v1519, %v1520
      %v1522 = vrot.slane %v1521, 1
      %v1523 = vadd.f32 %v1521, %v1522
      %v1524 = vsel %vm1376, %v238, 0.0
      %v1525 = vrot.slane %v1524, 4
      %v1526 = vadd.f32 %v1524, %v1525
      %v1527 = vrot.slane %v1526, 2
      %v1528 = vadd.f32 %v1526, %v1527
      %v1529 = vrot.slane %v1528, 1
      %v1530 = vadd.f32 %v1528, %v1529
      %v1531 = vsel %vm1376, %v239, 0.0
      %v1532 = vrot.slane %v1531, 4
      %v1533 = vadd.f32 %v1531, %v1532
      %v1534 = vrot.slane %v1533, 2
      %v1535 = vadd.f32 %v1533, %v1534
      %v1536 = vrot.slane %v1535, 1
      %v1537 = vadd.f32 %v1535, %v1536
      %v1538 = vsel %vm1376, %v240, 0.0
      %v1539 = vrot.slane %v1538, 4
      %v1540 = vadd.f32 %v1538, %v1539
      %v1541 = vrot.slane %v1540, 2
      %v1542 = vadd.f32 %v1540, %v1541
      %v1543 = vrot.slane %v1542, 1
      %v1544 = vadd.f32 %v1542, %v1543
      %v1545 = vsel %vm1376, %v241, 0.0
      %v1546 = vrot.slane %v1545, 4
      %v1547 = vadd.f32 %v1545, %v1546
      %v1548 = vrot.slane %v1547, 2
      %v1549 = vadd.f32 %v1547, %v1548
      %v1550 = vrot.slane %v1549, 1
      %v1551 = vadd.f32 %v1549, %v1550
      %v1552 = vsel %vm1376, %v242, 0.0
      %v1553 = vrot.slane %v1552, 4
      %v1554 = vadd.f32 %v1552, %v1553
      %v1555 = vrot.slane %v1554, 2
      %v1556 = vadd.f32 %v1554, %v1555
      %v1557 = vrot.slane %v1556, 1
      %v1558 = vadd.f32 %v1556, %v1557
      %v1559 = vsel %vm1376, %v243, 0.0
      %v1560 = vrot.slane %v1559, 4
      %v1561 = vadd.f32 %v1559, %v1560
      %v1562 = vrot.slane %v1561, 2
      %v1563 = vadd.f32 %v1561, %v1562
      %v1564 = vrot.slane %v1563, 1
      %v1565 = vadd.f32 %v1563, %v1564
      %v1566 = vsel %vm1376, %v244, 0.0
      %v1567 = vrot.slane %v1566, 4
      %v1568 = vadd.f32 %v1566, %v1567
      %v1569 = vrot.slane %v1568, 2
      %v1570 = vadd.f32 %v1568, %v1569
      %v1571 = vrot.slane %v1570, 1
      %v1572 = vadd.f32 %v1570, %v1571
      %v1573 = vsel %vm1376, %v245, 0.0
      %v1574 = vrot.slane %v1573, 4
      %v1575 = vadd.f32 %v1573, %v1574
      %v1576 = vrot.slane %v1575, 2
      %v1577 = vadd.f32 %v1575, %v1576
      %v1578 = vrot.slane %v1577, 1
      %v1579 = vadd.f32 %v1577, %v1578
      %v1580 = vsel %vm1376, %v246, 0.0
      %v1581 = vrot.slane %v1580, 4
      %v1582 = vadd.f32 %v1580, %v1581
      %v1583 = vrot.slane %v1582, 2
      %v1584 = vadd.f32 %v1582, %v1583
      %v1585 = vrot.slane %v1584, 1
      %v1586 = vadd.f32 %v1584, %v1585
      %v1587 = vsel %vm1376, %v247, 0.0
      %v1588 = vrot.slane %v1587, 4
      %v1589 = vadd.f32 %v1587, %v1588
      %v1590 = vrot.slane %v1589, 2
      %v1591 = vadd.f32 %v1589, %v1590
      %v1592 = vrot.slane %v1591, 1
      %v1593 = vadd.f32 %v1591, %v1592
      %v1594 = vsel %vm1376, %v248, 0.0
      %v1595 = vrot.slane %v1594, 4
      %v1596 = vadd.f32 %v1594, %v1595
      %v1597 = vrot.slane %v1596, 2
      %v1598 = vadd.f32 %v1596, %v1597
      %v1599 = vrot.slane %v1598, 1
      %v1600 = vadd.f32 %v1598, %v1599
      %v1601 = vsel %vm1376, %v249, 0.0
      %v1602 = vrot.slane %v1601, 4
      %v1603 = vadd.f32 %v1601, %v1602
      %v1604 = vrot.slane %v1603, 2
      %v1605 = vadd.f32 %v1603, %v1604
      %v1606 = vrot.slane %v1605, 1
      %v1607 = vadd.f32 %v1605, %v1606
      %v1608 = vsel %vm1376, %v250, 0.0
      %v1609 = vrot.slane %v1608, 4
      %v1610 = vadd.f32 %v1608, %v1609
      %v1611 = vrot.slane %v1610, 2
      %v1612 = vadd.f32 %v1610, %v1611
      %v1613 = vrot.slane %v1612, 1
      %v1614 = vadd.f32 %v1612, %v1613
      %v1615 = vsel %vm1376, %v251, 0.0
      %v1616 = vrot.slane %v1615, 4
      %v1617 = vadd.f32 %v1615, %v1616
      %v1618 = vrot.slane %v1617, 2
      %v1619 = vadd.f32 %v1617, %v1618
      %v1620 = vrot.slane %v1619, 1
      %v1621 = vadd.f32 %v1619, %v1620
      %v1622 = vsel %vm1376, %v252, 0.0
      %v1623 = vrot.slane %v1622, 4
      %v1624 = vadd.f32 %v1622, %v1623
      %v1625 = vrot.slane %v1624, 2
      %v1626 = vadd.f32 %v1624, %v1625
      %v1627 = vrot.slane %v1626, 1
      %v1628 = vadd.f32 %v1626, %v1627
      %v1629 = vsel %vm1376, %v253, 0.0
      %v1630 = vrot.slane %v1629, 4
      %v1631 = vadd.f32 %v1629, %v1630
      %v1632 = vrot.slane %v1631, 2
      %v1633 = vadd.f32 %v1631, %v1632
      %v1634 = vrot.slane %v1633, 1
      %v1635 = vadd.f32 %v1633, %v1634
      %v1636 = vsel %vm1376, %v254, 0.0
      %v1637 = vrot.slane %v1636, 4
      %v1638 = vadd.f32 %v1636, %v1637
      %v1639 = vrot.slane %v1638, 2
      %v1640 = vadd.f32 %v1638, %v1639
      %v1641 = vrot.slane %v1640, 1
      %v1642 = vadd.f32 %v1640, %v1641
      %v1643 = vsel %vm1376, %v255, 0.0
      %v1644 = vrot.slane %v1643, 4
      %v1645 = vadd.f32 %v1643, %v1644
      %v1646 = vrot.slane %v1645, 2
      %v1647 = vadd.f32 %v1645, %v1646
      %v1648 = vrot.slane %v1647, 1
      %v1649 = vadd.f32 %v1647, %v1648
      %v1650 = vsel %vm1376, %v256, 0.0
      %v1651 = vrot.slane %v1650, 4
      %v1652 = vadd.f32 %v1650, %v1651
      %v1653 = vrot.slane %v1652, 2
      %v1654 = vadd.f32 %v1652, %v1653
      %v1655 = vrot.slane %v1654, 1
      %v1656 = vadd.f32 %v1654, %v1655
      %v1657 = vsel %vm1376, %v257, 0.0
      %v1658 = vrot.slane %v1657, 4
      %v1659 = vadd.f32 %v1657, %v1658
      %v1660 = vrot.slane %v1659, 2
      %v1661 = vadd.f32 %v1659, %v1660
      %v1662 = vrot.slane %v1661, 1
      %v1663 = vadd.f32 %v1661, %v1662
      %v1664 = vsel %vm1376, %v258, 0.0
      %v1665 = vrot.slane %v1664, 4
      %v1666 = vadd.f32 %v1664, %v1665
      %v1667 = vrot.slane %v1666, 2
      %v1668 = vadd.f32 %v1666, %v1667
      %v1669 = vrot.slane %v1668, 1
      %v1670 = vadd.f32 %v1668, %v1669
      %v1671 = vsel %vm1376, %v259, 0.0
      %v1672 = vrot.slane %v1671, 4
      %v1673 = vadd.f32 %v1671, %v1672
      %v1674 = vrot.slane %v1673, 2
      %v1675 = vadd.f32 %v1673, %v1674
      %v1676 = vrot.slane %v1675, 1
      %v1677 = vadd.f32 %v1675, %v1676
      %v1678 = vsel %vm1376, %v260, 0.0
      %v1679 = vrot.slane %v1678, 4
      %v1680 = vadd.f32 %v1678, %v1679
      %v1681 = vrot.slane %v1680, 2
      %v1682 = vadd.f32 %v1680, %v1681
      %v1683 = vrot.slane %v1682, 1
      %v1684 = vadd.f32 %v1682, %v1683
      %v1685 = vsel %vm1376, %v261, 0.0
      %v1686 = vrot.slane %v1685, 4
      %v1687 = vadd.f32 %v1685, %v1686
      %v1688 = vrot.slane %v1687, 2
      %v1689 = vadd.f32 %v1687, %v1688
      %v1690 = vrot.slane %v1689, 1
      %v1691 = vadd.f32 %v1689, %v1690
      %v1692 = vsel %vm1376, %v262, 0.0
      %v1693 = vrot.slane %v1692, 4
      %v1694 = vadd.f32 %v1692, %v1693
      %v1695 = vrot.slane %v1694, 2
      %v1696 = vadd.f32 %v1694, %v1695
      %v1697 = vrot.slane %v1696, 1
      %v1698 = vadd.f32 %v1696, %v1697
      %v1699 = vsel %vm1376, %v263, 0.0
      %v1700 = vrot.slane %v1699, 4
      %v1701 = vadd.f32 %v1699, %v1700
      %v1702 = vrot.slane %v1701, 2
      %v1703 = vadd.f32 %v1701, %v1702
      %v1704 = vrot.slane %v1703, 1
      %v1705 = vadd.f32 %v1703, %v1704
      %v1706 = vsel %vm1376, %v264, 0.0
      %v1707 = vrot.slane %v1706, 4
      %v1708 = vadd.f32 %v1706, %v1707
      %v1709 = vrot.slane %v1708, 2
      %v1710 = vadd.f32 %v1708, %v1709
      %v1711 = vrot.slane %v1710, 1
      %v1712 = vadd.f32 %v1710, %v1711
      %v1713 = vsel %vm1376, %v265, 0.0
      %v1714 = vrot.slane %v1713, 4
      %v1715 = vadd.f32 %v1713, %v1714
      %v1716 = vrot.slane %v1715, 2
      %v1717 = vadd.f32 %v1715, %v1716
      %v1718 = vrot.slane %v1717, 1
      %v1719 = vadd.f32 %v1717, %v1718
      %v1720 = vsel %vm1376, %v266, 0.0
      %v1721 = vrot.slane %v1720, 4
      %v1722 = vadd.f32 %v1720, %v1721
      %v1723 = vrot.slane %v1722, 2
      %v1724 = vadd.f32 %v1722, %v1723
      %v1725 = vrot.slane %v1724, 1
      %v1726 = vadd.f32 %v1724, %v1725
      %v1727 = vsel %vm1376, %v267, 0.0
      %v1728 = vrot.slane %v1727, 4
      %v1729 = vadd.f32 %v1727, %v1728
      %v1730 = vrot.slane %v1729, 2
      %v1731 = vadd.f32 %v1729, %v1730
      %v1732 = vrot.slane %v1731, 1
      %v1733 = vadd.f32 %v1731, %v1732
      %v1734 = vsel %vm1376, %v268, 0.0
      %v1735 = vrot.slane %v1734, 4
      %v1736 = vadd.f32 %v1734, %v1735
      %v1737 = vrot.slane %v1736, 2
      %v1738 = vadd.f32 %v1736, %v1737
      %v1739 = vrot.slane %v1738, 1
      %v1740 = vadd.f32 %v1738, %v1739
      %v1741 = vsel %vm1376, %v269, 0.0
      %v1742 = vrot.slane %v1741, 4
      %v1743 = vadd.f32 %v1741, %v1742
      %v1744 = vrot.slane %v1743, 2
      %v1745 = vadd.f32 %v1743, %v1744
      %v1746 = vrot.slane %v1745, 1
      %v1747 = vadd.f32 %v1745, %v1746
      %v1748 = vsel %vm1376, %v270, 0.0
      %v1749 = vrot.slane %v1748, 4
      %v1750 = vadd.f32 %v1748, %v1749
      %v1751 = vrot.slane %v1750, 2
      %v1752 = vadd.f32 %v1750, %v1751
      %v1753 = vrot.slane %v1752, 1
      %v1754 = vadd.f32 %v1752, %v1753
      %v1755 = vsel %vm1376, %v271, 0.0
      %v1756 = vrot.slane %v1755, 4
      %v1757 = vadd.f32 %v1755, %v1756
      %v1758 = vrot.slane %v1757, 2
      %v1759 = vadd.f32 %v1757, %v1758
      %v1760 = vrot.slane %v1759, 1
      %v1761 = vadd.f32 %v1759, %v1760
      %v1762 = vsel %vm1376, %v272, 0.0
      %v1763 = vrot.slane %v1762, 4
      %v1764 = vadd.f32 %v1762, %v1763
      %v1765 = vrot.slane %v1764, 2
      %v1766 = vadd.f32 %v1764, %v1765
      %v1767 = vrot.slane %v1766, 1
      %v1768 = vadd.f32 %v1766, %v1767
      %v1769 = vsel %vm1376, %v273, 0.0
      %v1770 = vrot.slane %v1769, 4
      %v1771 = vadd.f32 %v1769, %v1770
      %v1772 = vrot.slane %v1771, 2
      %v1773 = vadd.f32 %v1771, %v1772
      %v1774 = vrot.slane %v1773, 1
      %v1775 = vadd.f32 %v1773, %v1774
      %v1776 = vsel %vm1376, %v274, 0.0
      %v1777 = vrot.slane %v1776, 4
      %v1778 = vadd.f32 %v1776, %v1777
      %v1779 = vrot.slane %v1778, 2
      %v1780 = vadd.f32 %v1778, %v1779
      %v1781 = vrot.slane %v1780, 1
      %v1782 = vadd.f32 %v1780, %v1781
      %v1783 = vsel %vm1376, %v275, 0.0
      %v1784 = vrot.slane %v1783, 4
      %v1785 = vadd.f32 %v1783, %v1784
      %v1786 = vrot.slane %v1785, 2
      %v1787 = vadd.f32 %v1785, %v1786
      %v1788 = vrot.slane %v1787, 1
      %v1789 = vadd.f32 %v1787, %v1788
      %v1790 = vsel %vm1376, %v276, 0.0
      %v1791 = vrot.slane %v1790, 4
      %v1792 = vadd.f32 %v1790, %v1791
      %v1793 = vrot.slane %v1792, 2
      %v1794 = vadd.f32 %v1792, %v1793
      %v1795 = vrot.slane %v1794, 1
      %v1796 = vadd.f32 %v1794, %v1795
      %v1797 = vsel %vm1376, %v277, 0.0
      %v1798 = vrot.slane %v1797, 4
      %v1799 = vadd.f32 %v1797, %v1798
      %v1800 = vrot.slane %v1799, 2
      %v1801 = vadd.f32 %v1799, %v1800
      %v1802 = vrot.slane %v1801, 1
      %v1803 = vadd.f32 %v1801, %v1802
      %v1804 = vsel %vm1376, %v278, 0.0
      %v1805 = vrot.slane %v1804, 4
      %v1806 = vadd.f32 %v1804, %v1805
      %v1807 = vrot.slane %v1806, 2
      %v1808 = vadd.f32 %v1806, %v1807
      %v1809 = vrot.slane %v1808, 1
      %v1810 = vadd.f32 %v1808, %v1809
      %v1811 = vsel %vm1376, %v279, 0.0
      %v1812 = vrot.slane %v1811, 4
      %v1813 = vadd.f32 %v1811, %v1812
      %v1814 = vrot.slane %v1813, 2
      %v1815 = vadd.f32 %v1813, %v1814
      %v1816 = vrot.slane %v1815, 1
      %v1817 = vadd.f32 %v1815, %v1816
      %v1818 = vsel %vm1376, %v280, 0.0
      %v1819 = vrot.slane %v1818, 4
      %v1820 = vadd.f32 %v1818, %v1819
      %v1821 = vrot.slane %v1820, 2
      %v1822 = vadd.f32 %v1820, %v1821
      %v1823 = vrot.slane %v1822, 1
      %v1824 = vadd.f32 %v1822, %v1823
      %v1825 = vmul.f32 %v1383, 0.125
      %v1826 = vmul.f32 %v1390, 0.125
      %v1827 = vmul.f32 %v1397, 0.125
      %v1828 = vmul.f32 %v1404, 0.125
      %v1829 = vmul.f32 %v1411, 0.125
      %v1830 = vmul.f32 %v1418, 0.125
      %v1831 = vmul.f32 %v1425, 0.125
      %v1832 = vmul.f32 %v1432, 0.125
      %v1833 = vmul.f32 %v1439, 0.125
      %v1834 = vmul.f32 %v1446, 0.125
      %v1835 = vmul.f32 %v1453, 0.125
      %v1836 = vmul.f32 %v1460, 0.125
      %v1837 = vmul.f32 %v1467, 0.125
      %v1838 = vmul.f32 %v1474, 0.125
      %v1839 = vmul.f32 %v1481, 0.125
      %v1840 = vmul.f32 %v1488, 0.125
      %v1841 = vmul.f32 %v1495, 0.125
      %v1842 = vmul.f32 %v1502, 0.125
      %v1843 = vmul.f32 %v1509, 0.125
      %v1844 = vmul.f32 %v1516, 0.125
      %v1845 = vmul.f32 %v1523, 0.125
      %v1846 = vmul.f32 %v1530, 0.125
      %v1847 = vmul.f32 %v1537, 0.125
      %v1848 = vmul.f32 %v1544, 0.125
      %v1849 = vmul.f32 %v1551, 0.125
      %v1850 = vmul.f32 %v1558, 0.125
      %v1851 = vmul.f32 %v1565, 0.125
      %v1852 = vmul.f32 %v1572, 0.125
      %v1853 = vmul.f32 %v1579, 0.125
      %v1854 = vmul.f32 %v1586, 0.125
      %v1855 = vmul.f32 %v1593, 0.125
      %v1856 = vmul.f32 %v1600, 0.125
      %v1857 = vmul.f32 %v1607, 0.125
      %v1858 = vmul.f32 %v1614, 0.125
      %v1859 = vmul.f32 %v1621, 0.125
      %v1860 = vmul.f32 %v1628, 0.125
      %v1861 = vmul.f32 %v1635, 0.125
      %v1862 = vmul.f32 %v1642, 0.125
      %v1863 = vmul.f32 %v1649, 0.125
      %v1864 = vmul.f32 %v1656, 0.125
      %v1865 = vmul.f32 %v1663, 0.125
      %v1866 = vmul.f32 %v1670, 0.125
      %v1867 = vmul.f32 %v1677, 0.125
      %v1868 = vmul.f32 %v1684, 0.125
      %v1869 = vmul.f32 %v1691, 0.125
      %v1870 = vmul.f32 %v1698, 0.125
      %v1871 = vmul.f32 %v1705, 0.125
      %v1872 = vmul.f32 %v1712, 0.125
      %v1873 = vmul.f32 %v1719, 0.125
      %v1874 = vmul.f32 %v1726, 0.125
      %v1875 = vmul.f32 %v1733, 0.125
      %v1876 = vmul.f32 %v1740, 0.125
      %v1877 = vmul.f32 %v1747, 0.125
      %v1878 = vmul.f32 %v1754, 0.125
      %v1879 = vmul.f32 %v1761, 0.125
      %v1880 = vmul.f32 %v1768, 0.125
      %v1881 = vmul.f32 %v1775, 0.125
      %v1882 = vmul.f32 %v1782, 0.125
      %v1883 = vmul.f32 %v1789, 0.125
      %v1884 = vmul.f32 %v1796, 0.125
      %v1885 = vmul.f32 %v1803, 0.125
      %v1886 = vmul.f32 %v1810, 0.125
      %v1887 = vmul.f32 %v1817, 0.125
      %v1888 = vmul.f32 %v1824, 0.125
      %v1889 = vsel %vm1376, %v1312, 0.0
      %v1890 = vrot.slane %v1889, 4
      %v1891 = vadd.f32 %v1889, %v1890
      %v1892 = vrot.slane %v1891, 2
      %v1893 = vadd.f32 %v1891, %v1892
      %v1894 = vrot.slane %v1893, 1
      %v1895 = vadd.f32 %v1893, %v1894
      %v1896 = vsel %vm1376, %v1313, 0.0
      %v1897 = vrot.slane %v1896, 4
      %v1898 = vadd.f32 %v1896, %v1897
      %v1899 = vrot.slane %v1898, 2
      %v1900 = vadd.f32 %v1898, %v1899
      %v1901 = vrot.slane %v1900, 1
      %v1902 = vadd.f32 %v1900, %v1901
      %v1903 = vsel %vm1376, %v1314, 0.0
      %v1904 = vrot.slane %v1903, 4
      %v1905 = vadd.f32 %v1903, %v1904
      %v1906 = vrot.slane %v1905, 2
      %v1907 = vadd.f32 %v1905, %v1906
      %v1908 = vrot.slane %v1907, 1
      %v1909 = vadd.f32 %v1907, %v1908
      %v1910 = vsel %vm1376, %v1315, 0.0
      %v1911 = vrot.slane %v1910, 4
      %v1912 = vadd.f32 %v1910, %v1911
      %v1913 = vrot.slane %v1912, 2
      %v1914 = vadd.f32 %v1912, %v1913
      %v1915 = vrot.slane %v1914, 1
      %v1916 = vadd.f32 %v1914, %v1915
      %v1917 = vsel %vm1376, %v1316, 0.0
      %v1918 = vrot.slane %v1917, 4
      %v1919 = vadd.f32 %v1917, %v1918
      %v1920 = vrot.slane %v1919, 2
      %v1921 = vadd.f32 %v1919, %v1920
      %v1922 = vrot.slane %v1921, 1
      %v1923 = vadd.f32 %v1921, %v1922
      %v1924 = vsel %vm1376, %v1317, 0.0
      %v1925 = vrot.slane %v1924, 4
      %v1926 = vadd.f32 %v1924, %v1925
      %v1927 = vrot.slane %v1926, 2
      %v1928 = vadd.f32 %v1926, %v1927
      %v1929 = vrot.slane %v1928, 1
      %v1930 = vadd.f32 %v1928, %v1929
      %v1931 = vsel %vm1376, %v1318, 0.0
      %v1932 = vrot.slane %v1931, 4
      %v1933 = vadd.f32 %v1931, %v1932
      %v1934 = vrot.slane %v1933, 2
      %v1935 = vadd.f32 %v1933, %v1934
      %v1936 = vrot.slane %v1935, 1
      %v1937 = vadd.f32 %v1935, %v1936
      %v1938 = vsel %vm1376, %v1319, 0.0
      %v1939 = vrot.slane %v1938, 4
      %v1940 = vadd.f32 %v1938, %v1939
      %v1941 = vrot.slane %v1940, 2
      %v1942 = vadd.f32 %v1940, %v1941
      %v1943 = vrot.slane %v1942, 1
      %v1944 = vadd.f32 %v1942, %v1943
      %v1945 = vsel %vm1376, %v1320, 0.0
      %v1946 = vrot.slane %v1945, 4
      %v1947 = vadd.f32 %v1945, %v1946
      %v1948 = vrot.slane %v1947, 2
      %v1949 = vadd.f32 %v1947, %v1948
      %v1950 = vrot.slane %v1949, 1
      %v1951 = vadd.f32 %v1949, %v1950
      %v1952 = vsel %vm1376, %v1321, 0.0
      %v1953 = vrot.slane %v1952, 4
      %v1954 = vadd.f32 %v1952, %v1953
      %v1955 = vrot.slane %v1954, 2
      %v1956 = vadd.f32 %v1954, %v1955
      %v1957 = vrot.slane %v1956, 1
      %v1958 = vadd.f32 %v1956, %v1957
      %v1959 = vsel %vm1376, %v1322, 0.0
      %v1960 = vrot.slane %v1959, 4
      %v1961 = vadd.f32 %v1959, %v1960
      %v1962 = vrot.slane %v1961, 2
      %v1963 = vadd.f32 %v1961, %v1962
      %v1964 = vrot.slane %v1963, 1
      %v1965 = vadd.f32 %v1963, %v1964
      %v1966 = vsel %vm1376, %v1323, 0.0
      %v1967 = vrot.slane %v1966, 4
      %v1968 = vadd.f32 %v1966, %v1967
      %v1969 = vrot.slane %v1968, 2
      %v1970 = vadd.f32 %v1968, %v1969
      %v1971 = vrot.slane %v1970, 1
      %v1972 = vadd.f32 %v1970, %v1971
      %v1973 = vsel %vm1376, %v1324, 0.0
      %v1974 = vrot.slane %v1973, 4
      %v1975 = vadd.f32 %v1973, %v1974
      %v1976 = vrot.slane %v1975, 2
      %v1977 = vadd.f32 %v1975, %v1976
      %v1978 = vrot.slane %v1977, 1
      %v1979 = vadd.f32 %v1977, %v1978
      %v1980 = vsel %vm1376, %v1325, 0.0
      %v1981 = vrot.slane %v1980, 4
      %v1982 = vadd.f32 %v1980, %v1981
      %v1983 = vrot.slane %v1982, 2
      %v1984 = vadd.f32 %v1982, %v1983
      %v1985 = vrot.slane %v1984, 1
      %v1986 = vadd.f32 %v1984, %v1985
      %v1987 = vsel %vm1376, %v1326, 0.0
      %v1988 = vrot.slane %v1987, 4
      %v1989 = vadd.f32 %v1987, %v1988
      %v1990 = vrot.slane %v1989, 2
      %v1991 = vadd.f32 %v1989, %v1990
      %v1992 = vrot.slane %v1991, 1
      %v1993 = vadd.f32 %v1991, %v1992
      %v1994 = vsel %vm1376, %v1327, 0.0
      %v1995 = vrot.slane %v1994, 4
      %v1996 = vadd.f32 %v1994, %v1995
      %v1997 = vrot.slane %v1996, 2
      %v1998 = vadd.f32 %v1996, %v1997
      %v1999 = vrot.slane %v1998, 1
      %v2000 = vadd.f32 %v1998, %v1999
      %v2001 = vsel %vm1376, %v1328, 0.0
      %v2002 = vrot.slane %v2001, 4
      %v2003 = vadd.f32 %v2001, %v2002
      %v2004 = vrot.slane %v2003, 2
      %v2005 = vadd.f32 %v2003, %v2004
      %v2006 = vrot.slane %v2005, 1
      %v2007 = vadd.f32 %v2005, %v2006
      %v2008 = vsel %vm1376, %v1329, 0.0
      %v2009 = vrot.slane %v2008, 4
      %v2010 = vadd.f32 %v2008, %v2009
      %v2011 = vrot.slane %v2010, 2
      %v2012 = vadd.f32 %v2010, %v2011
      %v2013 = vrot.slane %v2012, 1
      %v2014 = vadd.f32 %v2012, %v2013
      %v2015 = vsel %vm1376, %v1330, 0.0
      %v2016 = vrot.slane %v2015, 4
      %v2017 = vadd.f32 %v2015, %v2016
      %v2018 = vrot.slane %v2017, 2
      %v2019 = vadd.f32 %v2017, %v2018
      %v2020 = vrot.slane %v2019, 1
      %v2021 = vadd.f32 %v2019, %v2020
      %v2022 = vsel %vm1376, %v1331, 0.0
      %v2023 = vrot.slane %v2022, 4
      %v2024 = vadd.f32 %v2022, %v2023
      %v2025 = vrot.slane %v2024, 2
      %v2026 = vadd.f32 %v2024, %v2025
      %v2027 = vrot.slane %v2026, 1
      %v2028 = vadd.f32 %v2026, %v2027
      %v2029 = vsel %vm1376, %v1332, 0.0
      %v2030 = vrot.slane %v2029, 4
      %v2031 = vadd.f32 %v2029, %v2030
      %v2032 = vrot.slane %v2031, 2
      %v2033 = vadd.f32 %v2031, %v2032
      %v2034 = vrot.slane %v2033, 1
      %v2035 = vadd.f32 %v2033, %v2034
      %v2036 = vsel %vm1376, %v1333, 0.0
      %v2037 = vrot.slane %v2036, 4
      %v2038 = vadd.f32 %v2036, %v2037
      %v2039 = vrot.slane %v2038, 2
      %v2040 = vadd.f32 %v2038, %v2039
      %v2041 = vrot.slane %v2040, 1
      %v2042 = vadd.f32 %v2040, %v2041
      %v2043 = vsel %vm1376, %v1334, 0.0
      %v2044 = vrot.slane %v2043, 4
      %v2045 = vadd.f32 %v2043, %v2044
      %v2046 = vrot.slane %v2045, 2
      %v2047 = vadd.f32 %v2045, %v2046
      %v2048 = vrot.slane %v2047, 1
      %v2049 = vadd.f32 %v2047, %v2048
      %v2050 = vsel %vm1376, %v1335, 0.0
      %v2051 = vrot.slane %v2050, 4
      %v2052 = vadd.f32 %v2050, %v2051
      %v2053 = vrot.slane %v2052, 2
      %v2054 = vadd.f32 %v2052, %v2053
      %v2055 = vrot.slane %v2054, 1
      %v2056 = vadd.f32 %v2054, %v2055
      %v2057 = vsel %vm1376, %v1336, 0.0
      %v2058 = vrot.slane %v2057, 4
      %v2059 = vadd.f32 %v2057, %v2058
      %v2060 = vrot.slane %v2059, 2
      %v2061 = vadd.f32 %v2059, %v2060
      %v2062 = vrot.slane %v2061, 1
      %v2063 = vadd.f32 %v2061, %v2062
      %v2064 = vsel %vm1376, %v1337, 0.0
      %v2065 = vrot.slane %v2064, 4
      %v2066 = vadd.f32 %v2064, %v2065
      %v2067 = vrot.slane %v2066, 2
      %v2068 = vadd.f32 %v2066, %v2067
      %v2069 = vrot.slane %v2068, 1
      %v2070 = vadd.f32 %v2068, %v2069
      %v2071 = vsel %vm1376, %v1338, 0.0
      %v2072 = vrot.slane %v2071, 4
      %v2073 = vadd.f32 %v2071, %v2072
      %v2074 = vrot.slane %v2073, 2
      %v2075 = vadd.f32 %v2073, %v2074
      %v2076 = vrot.slane %v2075, 1
      %v2077 = vadd.f32 %v2075, %v2076
      %v2078 = vsel %vm1376, %v1339, 0.0
      %v2079 = vrot.slane %v2078, 4
      %v2080 = vadd.f32 %v2078, %v2079
      %v2081 = vrot.slane %v2080, 2
      %v2082 = vadd.f32 %v2080, %v2081
      %v2083 = vrot.slane %v2082, 1
      %v2084 = vadd.f32 %v2082, %v2083
      %v2085 = vsel %vm1376, %v1340, 0.0
      %v2086 = vrot.slane %v2085, 4
      %v2087 = vadd.f32 %v2085, %v2086
      %v2088 = vrot.slane %v2087, 2
      %v2089 = vadd.f32 %v2087, %v2088
      %v2090 = vrot.slane %v2089, 1
      %v2091 = vadd.f32 %v2089, %v2090
      %v2092 = vsel %vm1376, %v1341, 0.0
      %v2093 = vrot.slane %v2092, 4
      %v2094 = vadd.f32 %v2092, %v2093
      %v2095 = vrot.slane %v2094, 2
      %v2096 = vadd.f32 %v2094, %v2095
      %v2097 = vrot.slane %v2096, 1
      %v2098 = vadd.f32 %v2096, %v2097
      %v2099 = vsel %vm1376, %v1342, 0.0
      %v2100 = vrot.slane %v2099, 4
      %v2101 = vadd.f32 %v2099, %v2100
      %v2102 = vrot.slane %v2101, 2
      %v2103 = vadd.f32 %v2101, %v2102
      %v2104 = vrot.slane %v2103, 1
      %v2105 = vadd.f32 %v2103, %v2104
      %v2106 = vsel %vm1376, %v1343, 0.0
      %v2107 = vrot.slane %v2106, 4
      %v2108 = vadd.f32 %v2106, %v2107
      %v2109 = vrot.slane %v2108, 2
      %v2110 = vadd.f32 %v2108, %v2109
      %v2111 = vrot.slane %v2110, 1
      %v2112 = vadd.f32 %v2110, %v2111
      %v2113 = vsel %vm1376, %v1344, 0.0
      %v2114 = vrot.slane %v2113, 4
      %v2115 = vadd.f32 %v2113, %v2114
      %v2116 = vrot.slane %v2115, 2
      %v2117 = vadd.f32 %v2115, %v2116
      %v2118 = vrot.slane %v2117, 1
      %v2119 = vadd.f32 %v2117, %v2118
      %v2120 = vsel %vm1376, %v1345, 0.0
      %v2121 = vrot.slane %v2120, 4
      %v2122 = vadd.f32 %v2120, %v2121
      %v2123 = vrot.slane %v2122, 2
      %v2124 = vadd.f32 %v2122, %v2123
      %v2125 = vrot.slane %v2124, 1
      %v2126 = vadd.f32 %v2124, %v2125
      %v2127 = vsel %vm1376, %v1346, 0.0
      %v2128 = vrot.slane %v2127, 4
      %v2129 = vadd.f32 %v2127, %v2128
      %v2130 = vrot.slane %v2129, 2
      %v2131 = vadd.f32 %v2129, %v2130
      %v2132 = vrot.slane %v2131, 1
      %v2133 = vadd.f32 %v2131, %v2132
      %v2134 = vsel %vm1376, %v1347, 0.0
      %v2135 = vrot.slane %v2134, 4
      %v2136 = vadd.f32 %v2134, %v2135
      %v2137 = vrot.slane %v2136, 2
      %v2138 = vadd.f32 %v2136, %v2137
      %v2139 = vrot.slane %v2138, 1
      %v2140 = vadd.f32 %v2138, %v2139
      %v2141 = vsel %vm1376, %v1348, 0.0
      %v2142 = vrot.slane %v2141, 4
      %v2143 = vadd.f32 %v2141, %v2142
      %v2144 = vrot.slane %v2143, 2
      %v2145 = vadd.f32 %v2143, %v2144
      %v2146 = vrot.slane %v2145, 1
      %v2147 = vadd.f32 %v2145, %v2146
      %v2148 = vsel %vm1376, %v1349, 0.0
      %v2149 = vrot.slane %v2148, 4
      %v2150 = vadd.f32 %v2148, %v2149
      %v2151 = vrot.slane %v2150, 2
      %v2152 = vadd.f32 %v2150, %v2151
      %v2153 = vrot.slane %v2152, 1
      %v2154 = vadd.f32 %v2152, %v2153
      %v2155 = vsel %vm1376, %v1350, 0.0
      %v2156 = vrot.slane %v2155, 4
      %v2157 = vadd.f32 %v2155, %v2156
      %v2158 = vrot.slane %v2157, 2
      %v2159 = vadd.f32 %v2157, %v2158
      %v2160 = vrot.slane %v2159, 1
      %v2161 = vadd.f32 %v2159, %v2160
      %v2162 = vsel %vm1376, %v1351, 0.0
      %v2163 = vrot.slane %v2162, 4
      %v2164 = vadd.f32 %v2162, %v2163
      %v2165 = vrot.slane %v2164, 2
      %v2166 = vadd.f32 %v2164, %v2165
      %v2167 = vrot.slane %v2166, 1
      %v2168 = vadd.f32 %v2166, %v2167
      %v2169 = vsel %vm1376, %v1352, 0.0
      %v2170 = vrot.slane %v2169, 4
      %v2171 = vadd.f32 %v2169, %v2170
      %v2172 = vrot.slane %v2171, 2
      %v2173 = vadd.f32 %v2171, %v2172
      %v2174 = vrot.slane %v2173, 1
      %v2175 = vadd.f32 %v2173, %v2174
      %v2176 = vsel %vm1376, %v1353, 0.0
      %v2177 = vrot.slane %v2176, 4
      %v2178 = vadd.f32 %v2176, %v2177
      %v2179 = vrot.slane %v2178, 2
      %v2180 = vadd.f32 %v2178, %v2179
      %v2181 = vrot.slane %v2180, 1
      %v2182 = vadd.f32 %v2180, %v2181
      %v2183 = vsel %vm1376, %v1354, 0.0
      %v2184 = vrot.slane %v2183, 4
      %v2185 = vadd.f32 %v2183, %v2184
      %v2186 = vrot.slane %v2185, 2
      %v2187 = vadd.f32 %v2185, %v2186
      %v2188 = vrot.slane %v2187, 1
      %v2189 = vadd.f32 %v2187, %v2188
      %v2190 = vsel %vm1376, %v1355, 0.0
      %v2191 = vrot.slane %v2190, 4
      %v2192 = vadd.f32 %v2190, %v2191
      %v2193 = vrot.slane %v2192, 2
      %v2194 = vadd.f32 %v2192, %v2193
      %v2195 = vrot.slane %v2194, 1
      %v2196 = vadd.f32 %v2194, %v2195
      %v2197 = vsel %vm1376, %v1356, 0.0
      %v2198 = vrot.slane %v2197, 4
      %v2199 = vadd.f32 %v2197, %v2198
      %v2200 = vrot.slane %v2199, 2
      %v2201 = vadd.f32 %v2199, %v2200
      %v2202 = vrot.slane %v2201, 1
      %v2203 = vadd.f32 %v2201, %v2202
      %v2204 = vsel %vm1376, %v1357, 0.0
      %v2205 = vrot.slane %v2204, 4
      %v2206 = vadd.f32 %v2204, %v2205
      %v2207 = vrot.slane %v2206, 2
      %v2208 = vadd.f32 %v2206, %v2207
      %v2209 = vrot.slane %v2208, 1
      %v2210 = vadd.f32 %v2208, %v2209
      %v2211 = vsel %vm1376, %v1358, 0.0
      %v2212 = vrot.slane %v2211, 4
      %v2213 = vadd.f32 %v2211, %v2212
      %v2214 = vrot.slane %v2213, 2
      %v2215 = vadd.f32 %v2213, %v2214
      %v2216 = vrot.slane %v2215, 1
      %v2217 = vadd.f32 %v2215, %v2216
      %v2218 = vsel %vm1376, %v1359, 0.0
      %v2219 = vrot.slane %v2218, 4
      %v2220 = vadd.f32 %v2218, %v2219
      %v2221 = vrot.slane %v2220, 2
      %v2222 = vadd.f32 %v2220, %v2221
      %v2223 = vrot.slane %v2222, 1
      %v2224 = vadd.f32 %v2222, %v2223
      %v2225 = vsel %vm1376, %v1360, 0.0
      %v2226 = vrot.slane %v2225, 4
      %v2227 = vadd.f32 %v2225, %v2226
      %v2228 = vrot.slane %v2227, 2
      %v2229 = vadd.f32 %v2227, %v2228
      %v2230 = vrot.slane %v2229, 1
      %v2231 = vadd.f32 %v2229, %v2230
      %v2232 = vsel %vm1376, %v1361, 0.0
      %v2233 = vrot.slane %v2232, 4
      %v2234 = vadd.f32 %v2232, %v2233
      %v2235 = vrot.slane %v2234, 2
      %v2236 = vadd.f32 %v2234, %v2235
      %v2237 = vrot.slane %v2236, 1
      %v2238 = vadd.f32 %v2236, %v2237
      %v2239 = vsel %vm1376, %v1362, 0.0
      %v2240 = vrot.slane %v2239, 4
      %v2241 = vadd.f32 %v2239, %v2240
      %v2242 = vrot.slane %v2241, 2
      %v2243 = vadd.f32 %v2241, %v2242
      %v2244 = vrot.slane %v2243, 1
      %v2245 = vadd.f32 %v2243, %v2244
      %v2246 = vsel %vm1376, %v1363, 0.0
      %v2247 = vrot.slane %v2246, 4
      %v2248 = vadd.f32 %v2246, %v2247
      %v2249 = vrot.slane %v2248, 2
      %v2250 = vadd.f32 %v2248, %v2249
      %v2251 = vrot.slane %v2250, 1
      %v2252 = vadd.f32 %v2250, %v2251
      %v2253 = vsel %vm1376, %v1364, 0.0
      %v2254 = vrot.slane %v2253, 4
      %v2255 = vadd.f32 %v2253, %v2254
      %v2256 = vrot.slane %v2255, 2
      %v2257 = vadd.f32 %v2255, %v2256
      %v2258 = vrot.slane %v2257, 1
      %v2259 = vadd.f32 %v2257, %v2258
      %v2260 = vsel %vm1376, %v1365, 0.0
      %v2261 = vrot.slane %v2260, 4
      %v2262 = vadd.f32 %v2260, %v2261
      %v2263 = vrot.slane %v2262, 2
      %v2264 = vadd.f32 %v2262, %v2263
      %v2265 = vrot.slane %v2264, 1
      %v2266 = vadd.f32 %v2264, %v2265
      %v2267 = vsel %vm1376, %v1366, 0.0
      %v2268 = vrot.slane %v2267, 4
      %v2269 = vadd.f32 %v2267, %v2268
      %v2270 = vrot.slane %v2269, 2
      %v2271 = vadd.f32 %v2269, %v2270
      %v2272 = vrot.slane %v2271, 1
      %v2273 = vadd.f32 %v2271, %v2272
      %v2274 = vsel %vm1376, %v1367, 0.0
      %v2275 = vrot.slane %v2274, 4
      %v2276 = vadd.f32 %v2274, %v2275
      %v2277 = vrot.slane %v2276, 2
      %v2278 = vadd.f32 %v2276, %v2277
      %v2279 = vrot.slane %v2278, 1
      %v2280 = vadd.f32 %v2278, %v2279
      %v2281 = vsel %vm1376, %v1368, 0.0
      %v2282 = vrot.slane %v2281, 4
      %v2283 = vadd.f32 %v2281, %v2282
      %v2284 = vrot.slane %v2283, 2
      %v2285 = vadd.f32 %v2283, %v2284
      %v2286 = vrot.slane %v2285, 1
      %v2287 = vadd.f32 %v2285, %v2286
      %v2288 = vsel %vm1376, %v1369, 0.0
      %v2289 = vrot.slane %v2288, 4
      %v2290 = vadd.f32 %v2288, %v2289
      %v2291 = vrot.slane %v2290, 2
      %v2292 = vadd.f32 %v2290, %v2291
      %v2293 = vrot.slane %v2292, 1
      %v2294 = vadd.f32 %v2292, %v2293
      %v2295 = vsel %vm1376, %v1370, 0.0
      %v2296 = vrot.slane %v2295, 4
      %v2297 = vadd.f32 %v2295, %v2296
      %v2298 = vrot.slane %v2297, 2
      %v2299 = vadd.f32 %v2297, %v2298
      %v2300 = vrot.slane %v2299, 1
      %v2301 = vadd.f32 %v2299, %v2300
      %v2302 = vsel %vm1376, %v1371, 0.0
      %v2303 = vrot.slane %v2302, 4
      %v2304 = vadd.f32 %v2302, %v2303
      %v2305 = vrot.slane %v2304, 2
      %v2306 = vadd.f32 %v2304, %v2305
      %v2307 = vrot.slane %v2306, 1
      %v2308 = vadd.f32 %v2306, %v2307
      %v2309 = vsel %vm1376, %v1372, 0.0
      %v2310 = vrot.slane %v2309, 4
      %v2311 = vadd.f32 %v2309, %v2310
      %v2312 = vrot.slane %v2311, 2
      %v2313 = vadd.f32 %v2311, %v2312
      %v2314 = vrot.slane %v2313, 1
      %v2315 = vadd.f32 %v2313, %v2314
      %v2316 = vsel %vm1376, %v1373, 0.0
      %v2317 = vrot.slane %v2316, 4
      %v2318 = vadd.f32 %v2316, %v2317
      %v2319 = vrot.slane %v2318, 2
      %v2320 = vadd.f32 %v2318, %v2319
      %v2321 = vrot.slane %v2320, 1
      %v2322 = vadd.f32 %v2320, %v2321
      %v2323 = vsel %vm1376, %v1374, 0.0
      %v2324 = vrot.slane %v2323, 4
      %v2325 = vadd.f32 %v2323, %v2324
      %v2326 = vrot.slane %v2325, 2
      %v2327 = vadd.f32 %v2325, %v2326
      %v2328 = vrot.slane %v2327, 1
      %v2329 = vadd.f32 %v2327, %v2328
      %v2330 = vsel %vm1376, %v1375, 0.0
      %v2331 = vrot.slane %v2330, 4
      %v2332 = vadd.f32 %v2330, %v2331
      %v2333 = vrot.slane %v2332, 2
      %v2334 = vadd.f32 %v2332, %v2333
      %v2335 = vrot.slane %v2334, 1
      %v2336 = vadd.f32 %v2334, %v2335
      %v2337 = vmul.f32 %v1895, 0.125
      %v2338 = vmul.f32 %v1902, 0.125
      %v2339 = vmul.f32 %v1909, 0.125
      %v2340 = vmul.f32 %v1916, 0.125
      %v2341 = vmul.f32 %v1923, 0.125
      %v2342 = vmul.f32 %v1930, 0.125
      %v2343 = vmul.f32 %v1937, 0.125
      %v2344 = vmul.f32 %v1944, 0.125
      %v2345 = vmul.f32 %v1951, 0.125
      %v2346 = vmul.f32 %v1958, 0.125
      %v2347 = vmul.f32 %v1965, 0.125
      %v2348 = vmul.f32 %v1972, 0.125
      %v2349 = vmul.f32 %v1979, 0.125
      %v2350 = vmul.f32 %v1986, 0.125
      %v2351 = vmul.f32 %v1993, 0.125
      %v2352 = vmul.f32 %v2000, 0.125
      %v2353 = vmul.f32 %v2007, 0.125
      %v2354 = vmul.f32 %v2014, 0.125
      %v2355 = vmul.f32 %v2021, 0.125
      %v2356 = vmul.f32 %v2028, 0.125
      %v2357 = vmul.f32 %v2035, 0.125
      %v2358 = vmul.f32 %v2042, 0.125
      %v2359 = vmul.f32 %v2049, 0.125
      %v2360 = vmul.f32 %v2056, 0.125
      %v2361 = vmul.f32 %v2063, 0.125
      %v2362 = vmul.f32 %v2070, 0.125
      %v2363 = vmul.f32 %v2077, 0.125
      %v2364 = vmul.f32 %v2084, 0.125
      %v2365 = vmul.f32 %v2091, 0.125
      %v2366 = vmul.f32 %v2098, 0.125
      %v2367 = vmul.f32 %v2105, 0.125
      %v2368 = vmul.f32 %v2112, 0.125
      %v2369 = vmul.f32 %v2119, 0.125
      %v2370 = vmul.f32 %v2126, 0.125
      %v2371 = vmul.f32 %v2133, 0.125
      %v2372 = vmul.f32 %v2140, 0.125
      %v2373 = vmul.f32 %v2147, 0.125
      %v2374 = vmul.f32 %v2154, 0.125
      %v2375 = vmul.f32 %v2161, 0.125
      %v2376 = vmul.f32 %v2168, 0.125
      %v2377 = vmul.f32 %v2175, 0.125
      %v2378 = vmul.f32 %v2182, 0.125
      %v2379 = vmul.f32 %v2189, 0.125
      %v2380 = vmul.f32 %v2196, 0.125
      %v2381 = vmul.f32 %v2203, 0.125
      %v2382 = vmul.f32 %v2210, 0.125
      %v2383 = vmul.f32 %v2217, 0.125
      %v2384 = vmul.f32 %v2224, 0.125
      %v2385 = vmul.f32 %v2231, 0.125
      %v2386 = vmul.f32 %v2238, 0.125
      %v2387 = vmul.f32 %v2245, 0.125
      %v2388 = vmul.f32 %v2252, 0.125
      %v2389 = vmul.f32 %v2259, 0.125
      %v2390 = vmul.f32 %v2266, 0.125
      %v2391 = vmul.f32 %v2273, 0.125
      %v2392 = vmul.f32 %v2280, 0.125
      %v2393 = vmul.f32 %v2287, 0.125
      %v2394 = vmul.f32 %v2294, 0.125
      %v2395 = vmul.f32 %v2301, 0.125
      %v2396 = vmul.f32 %v2308, 0.125
      %v2397 = vmul.f32 %v2315, 0.125
      %v2398 = vmul.f32 %v2322, 0.125
      %v2399 = vmul.f32 %v2329, 0.125
      %v2400 = vmul.f32 %v2336, 0.125
      %vm2465 = vcmask 1041409
      %v2466 = vsel %vm2465, %v1826, %v1825
      %vm2467 = vcmask 1042434
      %v2468 = vsel %vm2467, %v1827, %v2466
      %vm2469 = vcmask 1043459
      %v2470 = vsel %vm2469, %v1828, %v2468
      %vm2471 = vcmask 1044484
      %v2472 = vsel %vm2471, %v1829, %v2470
      %vm2473 = vcmask 1045509
      %v2474 = vsel %vm2473, %v1830, %v2472
      %vm2475 = vcmask 1046534
      %v2476 = vsel %vm2475, %v1831, %v2474
      %vm2477 = vcmask 1047559
      %v2478 = vsel %vm2477, %v1832, %v2476
      %v2479 = vsel %vm2465, %v1834, %v1833
      %v2480 = vsel %vm2467, %v1835, %v2479
      %v2481 = vsel %vm2469, %v1836, %v2480
      %v2482 = vsel %vm2471, %v1837, %v2481
      %v2483 = vsel %vm2473, %v1838, %v2482
      %v2484 = vsel %vm2475, %v1839, %v2483
      %v2485 = vsel %vm2477, %v1840, %v2484
      %v2486 = vsel %vm2465, %v1842, %v1841
      %v2487 = vsel %vm2467, %v1843, %v2486
      %v2488 = vsel %vm2469, %v1844, %v2487
      %v2489 = vsel %vm2471, %v1845, %v2488
      %v2490 = vsel %vm2473, %v1846, %v2489
      %v2491 = vsel %vm2475, %v1847, %v2490
      %v2492 = vsel %vm2477, %v1848, %v2491
      %v2493 = vsel %vm2465, %v1850, %v1849
      %v2494 = vsel %vm2467, %v1851, %v2493
      %v2495 = vsel %vm2469, %v1852, %v2494
      %v2496 = vsel %vm2471, %v1853, %v2495
      %v2497 = vsel %vm2473, %v1854, %v2496
      %v2498 = vsel %vm2475, %v1855, %v2497
      %v2499 = vsel %vm2477, %v1856, %v2498
      %v2500 = vsel %vm2465, %v1858, %v1857
      %v2501 = vsel %vm2467, %v1859, %v2500
      %v2502 = vsel %vm2469, %v1860, %v2501
      %v2503 = vsel %vm2471, %v1861, %v2502
      %v2504 = vsel %vm2473, %v1862, %v2503
      %v2505 = vsel %vm2475, %v1863, %v2504
      %v2506 = vsel %vm2477, %v1864, %v2505
      %v2507 = vsel %vm2465, %v1866, %v1865
      %v2508 = vsel %vm2467, %v1867, %v2507
      %v2509 = vsel %vm2469, %v1868, %v2508
      %v2510 = vsel %vm2471, %v1869, %v2509
      %v2511 = vsel %vm2473, %v1870, %v2510
      %v2512 = vsel %vm2475, %v1871, %v2511
      %v2513 = vsel %vm2477, %v1872, %v2512
      %v2514 = vsel %vm2465, %v1874, %v1873
      %v2515 = vsel %vm2467, %v1875, %v2514
      %v2516 = vsel %vm2469, %v1876, %v2515
      %v2517 = vsel %vm2471, %v1877, %v2516
      %v2518 = vsel %vm2473, %v1878, %v2517
      %v2519 = vsel %vm2475, %v1879, %v2518
      %v2520 = vsel %vm2477, %v1880, %v2519
      %v2521 = vsel %vm2465, %v1882, %v1881
      %v2522 = vsel %vm2467, %v1883, %v2521
      %v2523 = vsel %vm2469, %v1884, %v2522
      %v2524 = vsel %vm2471, %v1885, %v2523
      %v2525 = vsel %vm2473, %v1886, %v2524
      %v2526 = vsel %vm2475, %v1887, %v2525
      %v2527 = vsel %vm2477, %v1888, %v2526
      %v2592 = vsel %vm2465, %v2338, %v2337
      %v2593 = vsel %vm2467, %v2339, %v2592
      %v2594 = vsel %vm2469, %v2340, %v2593
      %v2595 = vsel %vm2471, %v2341, %v2594
      %v2596 = vsel %vm2473, %v2342, %v2595
      %v2597 = vsel %vm2475, %v2343, %v2596
      %v2598 = vsel %vm2477, %v2344, %v2597
      %v2599 = vsel %vm2465, %v2346, %v2345
      %v2600 = vsel %vm2467, %v2347, %v2599
      %v2601 = vsel %vm2469, %v2348, %v2600
      %v2602 = vsel %vm2471, %v2349, %v2601
      %v2603 = vsel %vm2473, %v2350, %v2602
      %v2604 = vsel %vm2475, %v2351, %v2603
      %v2605 = vsel %vm2477, %v2352, %v2604
      %v2606 = vsel %vm2465, %v2354, %v2353
      %v2607 = vsel %vm2467, %v2355, %v2606
      %v2608 = vsel %vm2469, %v2356, %v2607
      %v2609 = vsel %vm2471, %v2357, %v2608
      %v2610 = vsel %vm2473, %v2358, %v2609
      %v2611 = vsel %vm2475, %v2359, %v2610
      %v2612 = vsel %vm2477, %v2360, %v2611
      %v2613 = vsel %vm2465, %v2362, %v2361
      %v2614 = vsel %vm2467, %v2363, %v2613
      %v2615 = vsel %vm2469, %v2364, %v2614
      %v2616 = vsel %vm2471, %v2365, %v2615
      %v2617 = vsel %vm2473, %v2366, %v2616
      %v2618 = vsel %vm2475, %v2367, %v2617
      %v2619 = vsel %vm2477, %v2368, %v2618
      %v2620 = vsel %vm2465, %v2370, %v2369
      %v2621 = vsel %vm2467, %v2371, %v2620
      %v2622 = vsel %vm2469, %v2372, %v2621
      %v2623 = vsel %vm2471, %v2373, %v2622
      %v2624 = vsel %vm2473, %v2374, %v2623
      %v2625 = vsel %vm2475, %v2375, %v2624
      %v2626 = vsel %vm2477, %v2376, %v2625
      %v2627 = vsel %vm2465, %v2378, %v2377
      %v2628 = vsel %vm2467, %v2379, %v2627
      %v2629 = vsel %vm2469, %v2380, %v2628
      %v2630 = vsel %vm2471, %v2381, %v2629
      %v2631 = vsel %vm2473, %v2382, %v2630
      %v2632 = vsel %vm2475, %v2383, %v2631
      %v2633 = vsel %vm2477, %v2384, %v2632
      %v2634 = vsel %vm2465, %v2386, %v2385
      %v2635 = vsel %vm2467, %v2387, %v2634
      %v2636 = vsel %vm2469, %v2388, %v2635
      %v2637 = vsel %vm2471, %v2389, %v2636
      %v2638 = vsel %vm2473, %v2390, %v2637
      %v2639 = vsel %vm2475, %v2391, %v2638
      %v2640 = vsel %vm2477, %v2392, %v2639
      %v2641 = vsel %vm2465, %v2394, %v2393
      %v2642 = vsel %vm2467, %v2395, %v2641
      %v2643 = vsel %vm2469, %v2396, %v2642
      %v2644 = vsel %vm2471, %v2397, %v2643
      %v2645 = vsel %vm2473, %v2398, %v2644
      %v2646 = vsel %vm2475, %v2399, %v2645
      %v2647 = vsel %vm2477, %v2400, %v2646
      %v2648 = vld [vmem:[%s2] sm:$0xff]
      %v2649 = vld [vmem:[%s2 + $0x8] sm:$0xff]
      %v2650 = vld [vmem:[%s2 + $0x10] sm:$0xff]
      %v2651 = vld [vmem:[%s2 + $0x18] sm:$0xff]
      %v2652 = vld [vmem:[%s3] sm:$0x1]
      %v2654 = vlaneseq
      %v2655 = vshrl.u32 %v2654, 7
      %v2656 = vsub.s32 0, %v2655
      %v2657 = vrot.slane %v2652, %v2656
      %v2659 = vsel %vm1376, %v2478, 0
      %v2661 = vsel %vm1376, %v2485, 0
      %v2663 = vsel %vm1376, %v2492, 0
      %v2665 = vsel %vm1376, %v2499, 0
      %v2667 = vsel %vm1376, %v2506, 0
      %v2669 = vsel %vm1376, %v2513, 0
      %v2671 = vsel %vm1376, %v2520, 0
      %v2673 = vsel %vm1376, %v2527, 0
      %v2675 = vsel %vm1376, %v2598, 0
      %v2677 = vsel %vm1376, %v2605, 0
      %v2679 = vsel %vm1376, %v2612, 0
      %v2681 = vsel %vm1376, %v2619, 0
      %v2683 = vsel %vm1376, %v2626, 0
      %v2685 = vsel %vm1376, %v2633, 0
      %v2687 = vsel %vm1376, %v2640, 0
      %v2689 = vsel %vm1376, %v2647, 0
      %2691 = vmatprep.subr.mxu0 0.0
      %2692 = vmatpush1.msra.mxu0 %v2648
      %2693 = vmatprep.subr.mxu0 0.0
      %2694 = vmatpush1.msra.mxu0 %v2649
      %2695 = vmatprep.subr.mxu0 0.0
      %2696 = vmatpush1.msra.mxu0 %v2650
      %2697 = vmatprep.subr.mxu0 0.0
      %2698 = vmatpush1.msra.mxu0 %v2651
      %2699 = vmatprep.subr.mxu0 0.0
      %2700 = vmatpush1.msra.mxu0 0.0
      %2701 = vmatprep.subr.mxu0 0.0
      %2702 = vmatpush1.msra.mxu0 0.0
      %2703 = vmatprep.subr.mxu0 0.0
      %2704 = vmatpush1.msra.mxu0 0.0
      %2705 = vmatprep.subr.mxu0 0.0
      %2706 = vmatpush1.msra.mxu0 0.0
      %2707 = vmatprep.subr.mxu0 0.0
      %2708 = vmatpush1.msra.mxu0 0.0
      %2709 = vmatprep.subr.mxu0 0.0
      %2710 = vmatpush1.msra.mxu0 0.0
      %2711 = vmatprep.subr.mxu0 0.0
      %2712 = vmatpush1.msra.mxu0 0.0
      %2713 = vmatprep.subr.mxu0 0.0
      %2714 = vmatpush1.msra.mxu0 0.0
      %2715 = vmatprep.subr.mxu0 0.0
      %2716 = vmatpush1.msra.mxu0 0.0
      %2717 = vmatprep.subr.mxu0 0.0
      %2718 = vmatpush1.msra.mxu0 0.0
      %2719 = vmatprep.subr.mxu0 0.0
      %2720 = vmatpush1.msra.mxu0 0.0
      %2721 = vmatprep.subr.mxu0 0.0
      %2722 = vmatpush1.msra.mxu0 0.0
      %2723 = vmatprep.subr.mxu0 0.0
      %2724 = vmatpush1.msra.mxu0 0.0
      %2725 = vmatprep.subr.mxu0 0.0
      %2726 = vmatpush1.msra.mxu0 0.0
      %2727 = vmatprep.subr.mxu0 0.0
      %2728 = vmatpush1.msra.mxu0 0.0
      %2729 = vmatprep.subr.mxu0 0.0
      %2730 = vmatpush1.msra.mxu0 0.0
      %2731 = vmatprep.subr.mxu0 0.0
      %2732 = vmatpush1.msra.mxu0 0.0
      %2733 = vmatprep.subr.mxu0 0.0
      %2734 = vmatpush1.msra.mxu0 0.0
      %2735 = vmatprep.subr.mxu0 0.0
      %2736 = vmatpush1.msra.mxu0 0.0
      %2737 = vmatprep.subr.mxu0 0.0
      %2738 = vmatpush1.msra.mxu0 0.0
      %2739 = vmatprep.subr.mxu0 0.0
      %2740 = vmatpush1.msra.mxu0 0.0
      %2741 = vmatprep.subr.mxu0 0.0
      %2742 = vmatpush1.msra.mxu0 0.0
      %2743 = vmatprep.subr.mxu0 0.0
      %2744 = vmatpush1.msra.mxu0 0.0
      %2745 = vmatprep.subr.mxu0 0.0
      %2746 = vmatpush1.msra.mxu0 0.0
      %2747 = vmatprep.subr.mxu0 0.0
      %2748 = vmatpush1.msra.mxu0 0.0
      %2749 = vmatprep.subr.mxu0 0.0
      %2750 = vmatpush1.msra.mxu0 0.0
      %2751 = vmatprep.subr.mxu0 0.0
      %2752 = vmatpush1.msra.mxu0 0.0
      %2753 = vmatprep.subr.mxu0 0.0
      %2754 = vmatpush1.msra.mxu0 0.0
      %2755 = vmatprep.mubr.f32.mxu0 0.0
      %2756 = vmatmul.mubr.f32.gmra.mrb[0].mxu0 %v2659
      %v2757 = vpop.f32.mrb[0].mxu0
      %v2758 = vadd.f32 %v2657, %v2757
      %v2759 = vpop.f32.mrb[0].mxu0
      %2760 = vmatprep.mubr.f32.mxu0 0.0
      %2761 = vmatmul.mubr.f32.gmra.mrb[0].mxu0 %v2661
      %v2762 = vpop.f32.mrb[0].mxu0
      %v2763 = vadd.f32 %v2657, %v2762
      %v2764 = vpop.f32.mrb[0].mxu0
      %2765 = vmatprep.mubr.f32.mxu0 0.0
      %2766 = vmatmul.mubr.f32.gmra.mrb[0].mxu0 %v2663
      %v2767 = vpop.f32.mrb[0].mxu0
      %v2768 = vadd.f32 %v2657, %v2767
      %v2769 = vpop.f32.mrb[0].mxu0
      %2770 = vmatprep.mubr.f32.mxu0 0.0
      %2771 = vmatmul.mubr.f32.gmra.mrb[0].mxu0 %v2665
      %v2772 = vpop.f32.mrb[0].mxu0
      %v2773 = vadd.f32 %v2657, %v2772
      %v2774 = vpop.f32.mrb[0].mxu0
      %2775 = vmatprep.mubr.f32.mxu0 0.0
      %2776 = vmatmul.mubr.f32.gmra.mrb[0].mxu0 %v2667
      %v2777 = vpop.f32.mrb[0].mxu0
      %v2778 = vadd.f32 %v2657, %v2777
      %v2779 = vpop.f32.mrb[0].mxu0
      %2780 = vmatprep.mubr.f32.mxu0 0.0
      %2781 = vmatmul.mubr.f32.gmra.mrb[0].mxu0 %v2669
      %v2782 = vpop.f32.mrb[0].mxu0
      %v2783 = vadd.f32 %v2657, %v2782
      %v2784 = vpop.f32.mrb[0].mxu0
      %2785 = vmatprep.mubr.f32.mxu0 0.0
      %2786 = vmatmul.mubr.f32.gmra.mrb[0].mxu0 %v2671
      %v2787 = vpop.f32.mrb[0].mxu0
      %v2788 = vadd.f32 %v2657, %v2787
      %v2789 = vpop.f32.mrb[0].mxu0
      %2790 = vmatprep.mubr.f32.mxu0 0.0
      %2791 = vmatmul.mubr.f32.gmra.mrb[0].mxu0 %v2673
      %v2792 = vpop.f32.mrb[0].mxu0
      %v2793 = vadd.f32 %v2657, %v2792
      %v2794 = vpop.f32.mrb[0].mxu0
      %2795 = vmatprep.mubr.f32.mxu0 0.0
      %2796 = vmatmul.mubr.f32.gmra.mrb[0].mxu0 %v2675
      %v2797 = vpop.f32.mrb[0].mxu0
      %v2798 = vadd.f32 %v2657, %v2797
      %v2799 = vpop.f32.mrb[0].mxu0
      %2800 = vmatprep.mubr.f32.mxu0 0.0
      %2801 = vmatmul.mubr.f32.gmra.mrb[0].mxu0 %v2677
      %v2802 = vpop.f32.mrb[0].mxu0
      %v2803 = vadd.f32 %v2657, %v2802
      %v2804 = vpop.f32.mrb[0].mxu0
      %2805 = vmatprep.mubr.f32.mxu0 0.0
      %2806 = vmatmul.mubr.f32.gmra.mrb[0].mxu0 %v2679
      %v2807 = vpop.f32.mrb[0].mxu0
      %v2808 = vadd.f32 %v2657, %v2807
      %v2809 = vpop.f32.mrb[0].mxu0
      %2810 = vmatprep.mubr.f32.mxu0 0.0
      %2811 = vmatmul.mubr.f32.gmra.mrb[0].mxu0 %v2681
      %v2812 = vpop.f32.mrb[0].mxu0
      %v2813 = vadd.f32 %v2657, %v2812
      %v2814 = vpop.f32.mrb[0].mxu0
      %2815 = vmatprep.mubr.f32.mxu0 0.0
      %2816 = vmatmul.mubr.f32.gmra.mrb[0].mxu0 %v2683
      %v2817 = vpop.f32.mrb[0].mxu0
      %v2818 = vadd.f32 %v2657, %v2817
      %v2819 = vpop.f32.mrb[0].mxu0
      %2820 = vmatprep.mubr.f32.mxu0 0.0
      %2821 = vmatmul.mubr.f32.gmra.mrb[0].mxu0 %v2685
      %v2822 = vpop.f32.mrb[0].mxu0
      %v2823 = vadd.f32 %v2657, %v2822
      %v2824 = vpop.f32.mrb[0].mxu0
      %2825 = vmatprep.mubr.f32.mxu0 0.0
      %2826 = vmatmul.mubr.f32.gmra.mrb[0].mxu0 %v2687
      %v2827 = vpop.f32.mrb[0].mxu0
      %v2828 = vadd.f32 %v2657, %v2827
      %v2829 = vpop.f32.mrb[0].mxu0
      %2830 = vmatprep.mubr.f32.mxu0 0.0
      %2831 = vmatmul.mubr.f32.gmra.mrb[0].mxu0 %v2689
      %v2832 = vpop.f32.mrb[0].mxu0
      %v2833 = vadd.f32 %v2657, %v2832
      %v2834 = vpop.f32.mrb[0].mxu0
      %2835 = vdwg.mxu0
      %2836 = vst.msk [vmem:[%s209] sm:$0xff] %vm1376, %v2758
      %2837 = vst.msk [vmem:[%s209 + $0x8] sm:$0xff] %vm1376, %v2763
      %2838 = vst.msk [vmem:[%s209 + $0x10] sm:$0xff] %vm1376, %v2768
      %2839 = vst.msk [vmem:[%s209 + $0x18] sm:$0xff] %vm1376, %v2773
      %2840 = vst.msk [vmem:[%s209 + $0x20] sm:$0xff] %vm1376, %v2778
      %2841 = vst.msk [vmem:[%s209 + $0x28] sm:$0xff] %vm1376, %v2783
      %2842 = vst.msk [vmem:[%s209 + $0x30] sm:$0xff] %vm1376, %v2788
      %2843 = vst.msk [vmem:[%s209 + $0x38] sm:$0xff] %vm1376, %v2793
      %2844 = vst.msk [vmem:[%s215] sm:$0xff] %vm1376, %v2798
      %2845 = vst.msk [vmem:[%s215 + $0x8] sm:$0xff] %vm1376, %v2803
      %2846 = vst.msk [vmem:[%s215 + $0x10] sm:$0xff] %vm1376, %v2808
      %2847 = vst.msk [vmem:[%s215 + $0x18] sm:$0xff] %vm1376, %v2813
      %2848 = vst.msk [vmem:[%s215 + $0x20] sm:$0xff] %vm1376, %v2818
      %2849 = vst.msk [vmem:[%s215 + $0x28] sm:$0xff] %vm1376, %v2823
      %2850 = vst.msk [vmem:[%s215 + $0x30] sm:$0xff] %vm1376, %v2828
      %2851 = vst.msk [vmem:[%s215 + $0x38] sm:$0xff] %vm1376, %v2833
      %s2852 = smul.u32 8, %s18
      %p2853 = scmp.lt.s32.totalorder %s2852, 15
      %s2854 = scalar_select %p2853, %s2852, 15
      %s2855 = smul.addr %s2854, 8
      %s2856 = scalar_lea.vmem %s4, %s2855
      %s2857 = smul.u32 8, %s18
      %p2858 = scmp.lt.s32.totalorder %s2857, 15
      %s2859 = scalar_select %p2858, %s2857, 15
      %s2860 = smul.addr %s2859, 8
      %s2861 = scalar_lea.vmem %s5, %s2860
      // Predicated region
      $region33: #{tpu_custom_call.1} parent=31 // pred_check
        %p2862 = pneg %p104
      $region34: #{tpu_custom_call.1} parent=31 // pred_check_branch
        %2864 = sbr.rel (%p2862) target = $region36
      $region35: #{tpu_custom_call.1} parent=31 // pred_region
        %s2865 = smul.u32 8, %s18
      $region36: #{tpu_custom_call.1} parent=31 // pred_fallthru
        _
      // Predicated region
      $region37: #{tpu_custom_call.1} parent=31 // pred_check
        %p2866 = pneg %p130
      $region38: #{tpu_custom_call.1} parent=31 // pred_check_branch
        %2868 = sbr.rel (%p2866) target = $region40
      $region39: #{tpu_custom_call.1} parent=31 // pred_region
        %s2869 = smul.u32 8, %s18
      $region40: #{tpu_custom_call.1} parent=31 // pred_fallthru
        _
    $region32: #{tpu_custom_call.1} parent=5 // pred_fallthru
      _
    %p2870 = scmp.le.s32.totalorder 2, %s13
    // Predicated region
    $region41: #{tpu_custom_call.1} parent=5 // pred_check
      %p2871 = pneg %p2870
    $region42: #{tpu_custom_call.1} parent=5 // pred_check_branch
      %2873 = sbr.rel (%p2871) target = $region44
    $region43: #{tpu_custom_call.1} parent=5 // pred_region
      %s2874 = ssub.s32 %s13, 2
      // Predicated region
      $region45: #{tpu_custom_call.1} parent=43 // pred_check
        %p2875 = pneg %p110
      $region46: #{tpu_custom_call.1} parent=43 // pred_check_branch
        %2877 = sbr.rel (%p2875) target = $region48
      $region47: #{tpu_custom_call.1} parent=43 // pred_region
        %s2878 = smul.u32 8, %s19
        %p2879 = scmp.lt.s32.totalorder %s2878, 15
        %s2880 = scalar_select %p2879, %s2878, 15
        %s2881 = smul.addr %s2880, 8
        %s2882 = scalar_lea.vmem %s4, %s2881
      $region48: #{tpu_custom_call.1} parent=43 // pred_fallthru
        _
      // Predicated region
      $region49: #{tpu_custom_call.1} parent=43 // pred_check
        %p2883 = pneg %p136
      $region50: #{tpu_custom_call.1} parent=43 // pred_check_branch
        %2885 = sbr.rel (%p2883) target = $region52
      $region51: #{tpu_custom_call.1} parent=43 // pred_region
        %s2886 = smul.u32 8, %s19
        %p2887 = scmp.lt.s32.totalorder %s2886, 15
        %s2888 = scalar_select %p2887, %s2886, 15
        %s2889 = smul.addr %s2888, 8
        %s2890 = scalar_lea.vmem %s5, %s2889
      $region52: #{tpu_custom_call.1} parent=43 // pred_fallthru
        _
    $region44: #{tpu_custom_call.1} parent=5 // pred_fallthru
      _
  $region6: #{tpu_custom_call.1} parent=0 // loop_footer
    %s17 = sadd.s32 1, %s13
  $region7: #{tpu_custom_call.1} parent=0 // loop_footer_branch
    %12 = sbr.rel target = $region3
  $region8: #{tpu_custom_call.1} parent=0 // loop_exit
    _

</llo_original>
